<compile_context>
chip_gen: v5e
topology: v5e:2x2
jax: 0.10.0
libtpu: 0.0.40
codegen_flags: <defaults>
</compile_context>

<pallas_src>
import math
from functools import lru_cache

import numpy as np
import jax
import jax.numpy as jnp
from jax.experimental import pallas as pl
from jax.experimental.pallas import tpu as pltpu

_VMEM_LIMIT = 32 * 1024 * 1024


def _round_up(x, m):
    return ((x + m - 1) // m) * m


@lru_cache(maxsize=None)
def _edge_masks(H, W):
    """0/1 masks (H*W, 1) that zero the horizontally wrapped depthwise taps."""
    col = np.arange(H * W) % W
    ml = (col != 0).astype(np.float32).reshape(H * W, 1)
    mr = (col != W - 1).astype(np.float32).reshape(H * W, 1)
    return jnp.asarray(ml, jnp.bfloat16), jnp.asarray(mr, jnp.bfloat16)


# --------------------------------------------------------------------------
# Fused matmul kernel:  out = PReLU(A @ W + bias)   (alpha == 1 -> LinearBlock)
# --------------------------------------------------------------------------
def _mm_kernel(a_ref, w_ref, b_ref, alpha_ref, o_ref):
    y = jnp.dot(a_ref[...], w_ref[...], preferred_element_type=jnp.float32)
    y = y + b_ref[...]
    o_ref[...] = jnp.where(y >= 0.0, y, y * alpha_ref[...]).astype(o_ref.dtype)


def _pick_bm(M):
    """Exact-divisor M tile (no host pad/slice); whole-M block when M is small."""
    if M <= 512:
        return M
    for bm in (2048, 1792, 1568, 1536, 1280, 1024, 896, 784, 768, 640,
               512, 448, 384, 320, 256, 192, 128, 64, 32, 16, 8):
        if bm * 2 <= M and M % bm == 0:
            return bm
    return M


@lru_cache(maxsize=None)
def _build_matmul(M, K, Cout, bm, out_dtype):
    call = pl.pallas_call(
        _mm_kernel,
        out_shape=jax.ShapeDtypeStruct((M, Cout), out_dtype),
        grid_spec=pltpu.PrefetchScalarGridSpec(
            num_scalar_prefetch=0,
            grid=(M // bm,),
            in_specs=[
                pl.BlockSpec((bm, K), lambda i: (i, 0)),
                pl.BlockSpec((K, Cout), lambda i: (0, 0)),
                pl.BlockSpec((1, Cout), lambda i: (0, 0)),
                pl.BlockSpec((1, Cout), lambda i: (0, 0)),
            ],
            out_specs=pl.BlockSpec((bm, Cout), lambda i: (i, 0)),
        ),
        compiler_params=pltpu.CompilerParams(
            dimension_semantics=("parallel",),
            vmem_limit_bytes=_VMEM_LIMIT,
        ),
    )
    return jax.jit(call)


def matmul_fused(a, w, bias, alpha, out_dtype=jnp.bfloat16):
    M, K = a.shape
    Cout = w.shape[1]
    bm = _pick_bm(M)
    return _build_matmul(M, K, Cout, bm, out_dtype)(
        a.astype(jnp.bfloat16), w.astype(jnp.bfloat16),
        bias.reshape(1, Cout).astype(jnp.float32),
        alpha.reshape(1, Cout).astype(jnp.float32))


# --------------------------------------------------------------------------
# Grouped 3x3 stride-1 conv (layer 2, densified to block-diagonal weight).
# Runs in the flattened (H*W, C) domain: taps are contiguous slices of a
# zero-padded VMEM buffer, horizontal wrap removed with edge masks.
# --------------------------------------------------------------------------
@lru_cache(maxsize=None)
def _build_grouped3x3(N, H, W, Cin, Cout):
    HW = H * W
    P0 = _round_up(W + 1, 8)
    L = HW + 2 * P0

    def kernel(x_ref, w_ref, ml_ref, mr_ref, b_ref, a_ref, o_ref, xpad_ref):
        xpad_ref[pl.ds(0, P0), :] = jnp.zeros((P0, Cin), jnp.bfloat16)
        xpad_ref[pl.ds(P0 + HW, P0), :] = jnp.zeros((P0, Cin), jnp.bfloat16)
        xpad_ref[pl.ds(P0, HW), :] = x_ref[0]
        acc = jnp.zeros((HW, Cout), jnp.float32)
        for kh in range(3):
            for kw in range(3):
                tap = xpad_ref[pl.ds(P0 + (kh - 1) * W + (kw - 1), HW), :]
                if kw == 0:
                    tap = tap * ml_ref[...]
                elif kw == 2:
                    tap = tap * mr_ref[...]
                acc = acc + jnp.dot(tap, w_ref[kh, kw],
                                    preferred_element_type=jnp.float32)
        y = acc + b_ref[...]
        y = jnp.where(y >= 0.0, y, y * a_ref[...])
        o_ref[0] = y.astype(o_ref.dtype)

    call = pl.pallas_call(
        kernel,
        out_shape=jax.ShapeDtypeStruct((N, HW, Cout), jnp.bfloat16),
        grid_spec=pltpu.PrefetchScalarGridSpec(
            num_scalar_prefetch=0,
            grid=(N,),
            in_specs=[
                pl.BlockSpec((1, HW, Cin), lambda n: (n, 0, 0)),
                pl.BlockSpec((3, 3, Cin, Cout), lambda n: (0, 0, 0, 0)),
                pl.BlockSpec((HW, 1), lambda n: (0, 0)),
                pl.BlockSpec((HW, 1), lambda n: (0, 0)),
                pl.BlockSpec((1, Cout), lambda n: (0, 0)),
                pl.BlockSpec((1, Cout), lambda n: (0, 0)),
            ],
            out_specs=pl.BlockSpec((1, HW, Cout), lambda n: (n, 0, 0)),
            scratch_shapes=[pltpu.VMEM((L, Cin), jnp.bfloat16)],
        ),
        compiler_params=pltpu.CompilerParams(
            dimension_semantics=("parallel",),
            vmem_limit_bytes=_VMEM_LIMIT,
        ),
    )
    return jax.jit(call)


def grouped_conv3x3(x_flat, p, H, W):
    N, HW, Cin = x_flat.shape
    Cout = p['w'].shape[-1]
    ml, mr = _edge_masks(H, W)
    return _build_grouped3x3(N, H, W, Cin, Cout)(
        x_flat, p['w'], ml, mr,
        p['b'].reshape(1, Cout), p['a'].reshape(1, Cout))


# --------------------------------------------------------------------------
# Fused residual bottleneck (stride 1): pw1(ConvBlock) -> dw3x3(ConvBlock)
# -> pw2(LinearBlock) -> + x, all in one kernel; the expanded intermediate
# never leaves VMEM.
# --------------------------------------------------------------------------
@lru_cache(maxsize=None)
def _build_residual_block(N, H, W, C, G):
    HW = H * W
    P0 = _round_up(W + 1, 8)
    L = HW + 2 * P0

    def kernel(x_ref, w1_ref, b1_ref, a1_ref, wd_ref, bd_ref, ad_ref,
               w2_ref, b2_ref, ml_ref, mr_ref, o_ref, ypad_ref):
        x = x_ref[0]                                          # (HW, C) bf16
        # pw1: 1x1 conv + BN bias + PReLU (C -> G), MXU with f32 accumulation
        y = jnp.dot(x, w1_ref[...], preferred_element_type=jnp.float32)
        y = y + b1_ref[...]
        y = jnp.where(y >= 0.0, y, y * a1_ref[...])
        # depthwise 3x3 (stride 1, pad 1) in the flattened domain: shifted
        # contiguous slices of a zero-padded VMEM buffer + edge masks.
        ypad_ref[pl.ds(0, P0), :] = jnp.zeros((P0, G), jnp.bfloat16)
        ypad_ref[pl.ds(P0 + HW, P0), :] = jnp.zeros((P0, G), jnp.bfloat16)
        ypad_ref[pl.ds(P0, HW), :] = y.astype(jnp.bfloat16)
        dacc = jnp.zeros((HW, G), jnp.float32)
        for kh in range(3):
            for kw in range(3):
                tap = ypad_ref[pl.ds(P0 + (kh - 1) * W + (kw - 1), HW), :]
                if kw == 0:
                    tap = tap * ml_ref[...]
                elif kw == 2:
                    tap = tap * mr_ref[...]
                dacc = dacc + tap * wd_ref[kh, kw, :]
        z = dacc + bd_ref[...]
        z = jnp.where(z >= 0.0, z, z * ad_ref[...])
        # pw2: 1x1 LinearBlock (G -> C) + BN bias + residual add
        out = jnp.dot(z.astype(jnp.bfloat16), w2_ref[...],
                      preferred_element_type=jnp.float32)
        out = out + b2_ref[...] + x.astype(jnp.float32)
        o_ref[0] = out.astype(o_ref.dtype)

    call = pl.pallas_call(
        kernel,
        out_shape=jax.ShapeDtypeStruct((N, HW, C), jnp.bfloat16),
        grid_spec=pltpu.PrefetchScalarGridSpec(
            num_scalar_prefetch=0,
            grid=(N,),
            in_specs=[
                pl.BlockSpec((1, HW, C), lambda n: (n, 0, 0)),
                pl.BlockSpec((C, G), lambda n: (0, 0)),
                pl.BlockSpec((1, G), lambda n: (0, 0)),
                pl.BlockSpec((1, G), lambda n: (0, 0)),
                pl.BlockSpec((3, 3, G), lambda n: (0, 0, 0)),
                pl.BlockSpec((1, G), lambda n: (0, 0)),
                pl.BlockSpec((1, G), lambda n: (0, 0)),
                pl.BlockSpec((G, C), lambda n: (0, 0)),
                pl.BlockSpec((1, C), lambda n: (0, 0)),
                pl.BlockSpec((HW, 1), lambda n: (0, 0)),
                pl.BlockSpec((HW, 1), lambda n: (0, 0)),
            ],
            out_specs=pl.BlockSpec((1, HW, C), lambda n: (n, 0, 0)),
            scratch_shapes=[pltpu.VMEM((L, G), jnp.bfloat16)],
        ),
        compiler_params=pltpu.CompilerParams(
            dimension_semantics=("parallel",),
            vmem_limit_bytes=_VMEM_LIMIT,
        ),
    )
    return jax.jit(call)


def residual_module(x_flat, p, H, W):
    N, HW, C = x_flat.shape
    G = p['dw']['w_dw'].shape[-1]
    ml, mr = _edge_masks(H, W)
    return _build_residual_block(N, H, W, C, G)(
        x_flat,
        p['pw1']['w'], p['pw1']['b'].reshape(1, G), p['pw1']['a'].reshape(1, G),
        p['dw']['w_dw'], p['dw']['b'].reshape(1, G), p['dw']['a'].reshape(1, G),
        p['pw2']['w'], p['pw2']['b'].reshape(1, C),
        ml, mr)


# --------------------------------------------------------------------------
# Depthwise 3x3 stride-2 (pad 1) + BN + PReLU.  The padded map is split into
# 4 even/odd phase maps on the host once, so every in-kernel tap is a plain
# contiguous slice (no strided ref indexing).
# --------------------------------------------------------------------------
@lru_cache(maxsize=None)
def _build_dw3x3_s2(N, Hp, Wp, Ho, Wo, C, cb=128):
    def kernel(xee_ref, xeo_ref, xoe_ref, xoo_ref, wd_ref, b_ref, a_ref, o_ref):
        phases = ((xee_ref, xeo_ref), (xoe_ref, xoo_ref))
        acc = jnp.zeros((Ho, Wo, cb), jnp.float32)
        for kh in range(3):
            for kw in range(3):
                ph = phases[kh % 2][kw % 2]
                tap = ph[0, pl.ds(kh // 2, Ho), pl.ds(kw // 2, Wo), :]
                acc = acc + tap * wd_ref[kh, kw, :]
        y = acc + b_ref[0, :]
        y = jnp.where(y >= 0.0, y, y * a_ref[0, :])
        o_ref[0] = y.astype(o_ref.dtype)

    phase_spec = pl.BlockSpec((1, Hp, Wp, cb), lambda n, c: (n, 0, 0, c))
    call = pl.pallas_call(
        kernel,
        out_shape=jax.ShapeDtypeStruct((N, Ho, Wo, C), jnp.bfloat16),
        grid_spec=pltpu.PrefetchScalarGridSpec(
            num_scalar_prefetch=0,
            grid=(N, C // cb),
            in_specs=[
                phase_spec, phase_spec, phase_spec, phase_spec,
                pl.BlockSpec((3, 3, cb), lambda n, c: (0, 0, c)),
                pl.BlockSpec((1, cb), lambda n, c: (0, c)),
                pl.BlockSpec((1, cb), lambda n, c: (0, c)),
            ],
            out_specs=pl.BlockSpec((1, Ho, Wo, cb), lambda n, c: (n, 0, 0, c)),
        ),
        compiler_params=pltpu.CompilerParams(
            dimension_semantics=("parallel", "parallel"),
            vmem_limit_bytes=_VMEM_LIMIT,
        ),
    )
    return jax.jit(call)


def dw3x3_s2(x_nhwc, p):
    N, H, W, C = x_nhwc.shape
    Ho = (H - 1) // 2 + 1
    Wo = (W - 1) // 2 + 1
    xp = jnp.pad(x_nhwc, ((0, 0), (1, 1), (1, 1), (0, 0)))
    xee = xp[:, 0::2, 0::2, :]
    xeo = xp[:, 0::2, 1::2, :]
    xoe = xp[:, 1::2, 0::2, :]
    xoo = xp[:, 1::2, 1::2, :]
    Hp, Wp = xee.shape[1], xee.shape[2]
    return _build_dw3x3_s2(N, Hp, Wp, Ho, Wo, C)(
        xee, xeo, xoe, xoo, p['w_dw'],
        p['b'].reshape(1, C), p['a'].reshape(1, C))


def depthwise_module_s2(x_flat, p, H, W):
    """DepthWise module (stride 2, no residual): pw1 -> dw3x3/s2 -> pw2."""
    N, HW, Cin = x_flat.shape
    G = p['dw']['w_dw'].shape[-1]
    Cout = p['pw2']['w'].shape[1]
    y = matmul_fused(x_flat.reshape(N * HW, Cin),
                     p['pw1']['w'], p['pw1']['b'], p['pw1']['a'])
    y = dw3x3_s2(y.reshape(N, H, W, G), p['dw'])
    _, Ho, Wo, _ = y.shape
    z = matmul_fused(y.reshape(N * Ho * Wo, G),
                     p['pw2']['w'], p['pw2']['b'], p['pw2']['a'])
    return z.reshape(N, Ho * Wo, Cout), Ho, Wo


# --------------------------------------------------------------------------
# Stem: first 3x3 stride-2 conv (Cin=3) via bf16 host im2col + fused matmul.
# --------------------------------------------------------------------------
def conv_stem(x_nhwc, p):
    N, H, W, Cin = x_nhwc.shape
    Ho = (H - 1) // 2 + 1
    Wo = (W - 1) // 2 + 1
    xp = jnp.pad(x_nhwc, ((0, 0), (1, 1), (1, 1), (0, 0)))
    cols = [xp[:, i:i + 2 * Ho - 1:2, j:j + 2 * Wo - 1:2, :]
            for i in range(3) for j in range(3)]
    patches = jnp.concatenate(cols, axis=-1).reshape(N * Ho * Wo, 9 * Cin)
    y = matmul_fused(patches, p['w'], p['b'], p['a'])
    return y.reshape(N, Ho * Wo, -1), Ho, Wo


# --------------------------------------------------------------------------
# GDC: depthwise 7x7 over the 7x7 map (per-channel weighted spatial sum) + BN,
# then Linear(512,512) + BN1d via the fused matmul (alpha = 1).
# --------------------------------------------------------------------------
@lru_cache(maxsize=None)
def _build_gdc(N, S, C):
    def kernel(x_ref, w_ref, b_ref, o_ref):
        y = jnp.sum(x_ref[...].astype(jnp.float32) * w_ref[...][None, :, :],
                    axis=1)
        o_ref[...] = y + b_ref[...]

    call = pl.pallas_call(
        kernel,
        out_shape=jax.ShapeDtypeStruct((N, C), jnp.float32),
        compiler_params=pltpu.CompilerParams(vmem_limit_bytes=_VMEM_LIMIT),
    )
    return jax.jit(call)


def gdc(x_flat, p):
    N, S, C = x_flat.shape                       # (N, 49, 512)
    y = _build_gdc(N, S, C)(x_flat.astype(jnp.bfloat16), p['w_dw7'],
                            p['bias7'].reshape(1, C))
    ones = jnp.ones((p['w_lin'].shape[1],), jnp.float32)
    return matmul_fused(y, p['w_lin'], p['bias1d'], ones, out_dtype=jnp.float32)


# --------------------------------------------------------------------------
# Forward pass (activations kept in flattened (N, H*W, C) channels-last bf16)
# --------------------------------------------------------------------------
def forward(x_nchw, P):
    x = jnp.transpose(x_nchw, (0, 2, 3, 1)).astype(jnp.bfloat16)  # NHWC bf16
    x, H, W = conv_stem(x, P['l1'])                       # 112 -> 56, C=128
    x = grouped_conv3x3(x, P['l2'], H, W)                 # grouped 3x3 (g=64)
    x, H, W = depthwise_module_s2(x, P['l3'], H, W)       # 56 -> 28, C=128
    for blk in P['l4']:                                   # 4 fused residuals
        x = residual_module(x, blk, H, W)
    x, H, W = depthwise_module_s2(x, P['l5'], H, W)       # 28 -> 14, C=256
    for blk in P['l6']:                                   # 6 fused residuals
        x = residual_module(x, blk, H, W)
    x, H, W = depthwise_module_s2(x, P['l7'], H, W)       # 14 -> 7, C=256
    for blk in P['l8']:                                   # 2 fused residuals
        x = residual_module(x, blk, H, W)
    N, HW, C = x.shape
    y = matmul_fused(x.reshape(N * HW, C), P['conv_sep']['w'],
                     P['conv_sep']['b'], P['conv_sep']['a'])   # conv_sep 256->512
    return gdc(y.reshape(N, HW, -1), P['gdc'])            # (N, 512) f32


# --------------------------------------------------------------------------
# Deterministic parameter init (shapes from MobileFaceNet.__init__, scale=2).
# Inference-mode BN scale is folded into the weights; weights stored in bf16.
# --------------------------------------------------------------------------
def init_params(key):
    kit = iter(jax.random.split(key, 64))

    def nk():
        return next(kit)

    def kaiming(shape, fan_out):
        return jax.random.normal(nk(), shape, jnp.float32) * math.sqrt(2.0 / fan_out)

    inv = 1.0 / math.sqrt(1.0 + 1e-5)     # BN: mean=0, var=1, gamma=1, beta=0

    def mk_pw(in_c, out_c, prelu=True):
        w = kaiming((out_c, in_c, 1, 1), out_c).reshape(out_c, in_c)
        a = (jnp.full((out_c,), 0.25, jnp.float32) if prelu
             else jnp.ones((out_c,), jnp.float32))
        return {'w': (w.T * inv).astype(jnp.bfloat16),
                'b': jnp.zeros((out_c,), jnp.float32), 'a': a}

    def mk_dw3(c):
        w = kaiming((c, 1, 3, 3), c * 9)
        return {'w_dw': (jnp.transpose(w[:, 0], (1, 2, 0)) * inv).astype(jnp.bfloat16),
                'b': jnp.zeros((c,), jnp.float32),
                'a': jnp.full((c,), 0.25, jnp.float32)}

    def mk_stem(in_c, out_c):
        w = kaiming((out_c, in_c, 3, 3), out_c * 9)
        w_mat = jnp.transpose(w, (2, 3, 1, 0)).reshape(9 * in_c, out_c) * inv
        return {'w': w_mat.astype(jnp.bfloat16),
                'b': jnp.zeros((out_c,), jnp.float32),
                'a': jnp.full((out_c,), 0.25, jnp.float32)}

    def mk_grouped3(in_c, out_c, groups):
        w = np.asarray(kaiming((out_c, in_c // groups, 3, 3), out_c * 9))
        # exact block-diagonal densification of the grouped weight; the extra
        # zeros are absorbed by the MXU (negligible on v6e/v7x, acceptable on
        # v5e for this single 56x56 layer).
        dense = np.zeros((out_c, in_c, 3, 3), np.float32)
        ipg, opg = in_c // groups, out_c // groups
        for g in range(groups):
            dense[g * opg:(g + 1) * opg, g * ipg:(g + 1) * ipg] = w[g * opg:(g + 1) * opg]
        w33 = jnp.transpose(jnp.asarray(dense), (2, 3, 1, 0)) * inv   # (3,3,in,out)
        return {'w': w33.astype(jnp.bfloat16),
                'b': jnp.zeros((out_c,), jnp.float32),
                'a': jnp.full((out_c,), 0.25, jnp.float32)}

    def mk_dwmod(in_c, out_c, groups):
        return {'pw1': mk_pw(in_c, groups, True),
                'dw': mk_dw3(groups),
                'pw2': mk_pw(groups, out_c, False)}

    P = {}
    P['l1'] = mk_stem(3, 128)
    P['l2'] = mk_grouped3(128, 128, 64)
    P['l3'] = mk_dwmod(128, 128, 128)
    P['l4'] = [mk_dwmod(128, 128, 128) for _ in range(4)]
    P['l5'] = mk_dwmod(128, 256, 256)
    P['l6'] = [mk_dwmod(256, 256, 256) for _ in range(6)]
    P['l7'] = mk_dwmod(256, 256, 512)
    P['l8'] = [mk_dwmod(256, 256, 256) for _ in range(2)]
    P['conv_sep'] = mk_pw(256, 512, True)

    w7 = kaiming((512, 1, 7, 7), 512 * 49)
    wl = kaiming((512, 512), 512)                  # Linear(512, 512, bias=False)
    P['gdc'] = {'w_dw7': (w7[:, 0].reshape(512, 49).T * inv).astype(jnp.float32),
                'bias7': jnp.zeros((512,), jnp.float32),
                'w_lin': (wl.T * inv).astype(jnp.bfloat16),
                'bias1d': jnp.zeros((512,), jnp.float32)}
    return P


if __name__ == "__main__":
    key = jax.random.PRNGKey(0)
    pkey, xkey = jax.random.split(key)
    params = init_params(pkey)
    # The GDC stage needs a 7x7 final map, so the smallest input consistent
    # with the module is 112x112 RGB; batch = 2.
    x = jax.random.normal(xkey, (2, 3, 112, 112), jnp.float32)
    fwd = jax.jit(forward)
    emb = jax.block_until_ready(fwd(x, params))
    assert emb.shape == (2, 512) and emb.dtype == jnp.float32
    assert bool(jnp.all(jnp.isfinite(emb)))
    print("KERNEL_OK")
</pallas_src>

<mosaic_0001>
module attributes {stable_mosaic.version = 11 : i64} {
  func.func @_mm_kernel(%arg0: i32, %arg1: memref<1568x27xbf16, #tpu.memory_space<vmem>>, %arg2: memref<27x128xbf16, #tpu.memory_space<vmem>>, %arg3: memref<1x128xf32, #tpu.memory_space<vmem>>, %arg4: memref<1x128xf32, #tpu.memory_space<vmem>>, %arg5: memref<1568x128xbf16, #tpu.memory_space<vmem>>) attributes {dimension_semantics = [#tpu.dimension_semantics<parallel>], iteration_bounds = array<i64: 4>, scalar_prefetch = 0 : i64, scratch_operands = 0 : i64, tpu.core_type = #tpu.core_type<tc>, window_params = [{transform_indices = @transform_0, window_bounds = array<i64: 1568, 27>}, {pipeline_mode = #tpu.pipeline_mode<synchronous>, transform_indices = @transform_1, window_bounds = array<i64: 27, 128>}, {pipeline_mode = #tpu.pipeline_mode<synchronous>, transform_indices = @transform_2, window_bounds = array<i64: 1, 128>}, {pipeline_mode = #tpu.pipeline_mode<synchronous>, transform_indices = @transform_3, window_bounds = array<i64: 1, 128>}, {transform_indices = @transform_4, window_bounds = array<i64: 1568, 128>}]} {
    %c0 = arith.constant 0 : index
    %c0_0 = arith.constant 0 : index
    %0 = vector.load %arg1[%c0, %c0_0] : memref<1568x27xbf16, #tpu.memory_space<vmem>>, vector<1568x27xbf16>
    %c0_1 = arith.constant 0 : index
    %c0_2 = arith.constant 0 : index
    %1 = vector.load %arg2[%c0_1, %c0_2] : memref<27x128xbf16, #tpu.memory_space<vmem>>, vector<27x128xbf16>
    %cst = arith.constant dense<0.000000e+00> : vector<1568x128xf32>
    %2 = tpu.matmul %0, %1, %cst {dimension_numbers = #tpu.dot_dimension_numbers<[1], [0], [0], [1], [0, 0, 1, 1], [], []>} : vector<1568x27xbf16>, vector<27x128xbf16>, vector<1568x128xf32> -> vector<1568x128xf32>
    %c0_3 = arith.constant 0 : index
    %c0_4 = arith.constant 0 : index
    %3 = vector.load %arg3[%c0_3, %c0_4] : memref<1x128xf32, #tpu.memory_space<vmem>>, vector<1x128xf32>
    %4 = vector.broadcast %3 : vector<1x128xf32> to vector<1568x128xf32>
    %5 = arith.addf %2, %4 : vector<1568x128xf32>
    %cst_5 = arith.constant 0.000000e+00 : f32
    %6 = vector.broadcast %cst_5 : f32 to vector<1568x128xf32>
    %7 = arith.cmpf oge, %5, %6 : vector<1568x128xf32>
    %c0_6 = arith.constant 0 : index
    %c0_7 = arith.constant 0 : index
    %8 = vector.load %arg4[%c0_6, %c0_7] : memref<1x128xf32, #tpu.memory_space<vmem>>, vector<1x128xf32>
    %9 = vector.broadcast %8 : vector<1x128xf32> to vector<1568x128xf32>
    %10 = arith.mulf %5, %9 : vector<1568x128xf32>
    %11 = arith.select %7, %5, %10 : vector<1568x128xi1>, vector<1568x128xf32>
    %12 = arith.truncf %11 : vector<1568x128xf32> to vector<1568x128xbf16>
    %c0_8 = arith.constant 0 : index
    %c0_9 = arith.constant 0 : index
    %13 = vector.load %arg5[%c0_8, %c0_9] : memref<1568x128xbf16, #tpu.memory_space<vmem>>, vector<1568x128xbf16>
    tpu.vector_store %arg5[%c0_8, %c0_9], %12 {strides = array<i32>} : memref<1568x128xbf16, #tpu.memory_space<vmem>>, vector<1568x128xbf16>,
    return
  }
  func.func @transform_0(%arg0: i32) -> (i32, i32) {
    %c0_i32 = arith.constant 0 : i32
    %c0_i32_0 = arith.constant 0 : i32
    return %arg0, %c0_i32 : i32, i32
  }
  func.func @transform_1(%arg0: i32) -> (i32, i32) {
    %c0_i32 = arith.constant 0 : i32
    %c0_i32_0 = arith.constant 0 : i32
    %c0_i32_1 = arith.constant 0 : i32
    return %c0_i32, %c0_i32_0 : i32, i32
  }
  func.func @transform_2(%arg0: i32) -> (i32, i32) {
    %c0_i32 = arith.constant 0 : i32
    %c0_i32_0 = arith.constant 0 : i32
    %c0_i32_1 = arith.constant 0 : i32
    return %c0_i32, %c0_i32_0 : i32, i32
  }
  func.func @transform_3(%arg0: i32) -> (i32, i32) {
    %c0_i32 = arith.constant 0 : i32
    %c0_i32_0 = arith.constant 0 : i32
    %c0_i32_1 = arith.constant 0 : i32
    return %c0_i32, %c0_i32_0 : i32, i32
  }
  func.func @transform_4(%arg0: i32) -> (i32, i32) {
    %c0_i32 = arith.constant 0 : i32
    %c0_i32_0 = arith.constant 0 : i32
    return %arg0, %c0_i32 : i32, i32
  }
}

</mosaic_0001>

<llo_original>
// kernel: tpu_custom_call.1
$region0: #{tpu_custom_call.1}
  #allocation0 [shape = 'u32[]', space=smem, size = 0x4, offset = 0x4, fixed_abs, tag = 'smem constant byte address 0x4 - core index']
  #allocation1 [shape = 'u32[72,128]{1,0:T(1,128)}', space=vmem, size = 0x9000, scoped, tag = 'internal scratch']
  %s0 = inlined_call_operand.vmem [shape: bf16[6272,27], index: 0, kind: input, shape index: {}]
  %s1 = inlined_call_operand.vmem [shape: bf16[27,128], index: 1, kind: input, shape index: {}]
  %s2 = inlined_call_operand.vmem [shape: f32[1,128], index: 2, kind: input, shape index: {}]
  %s3 = inlined_call_operand.vmem [shape: f32[1,128], index: 3, kind: input, shape index: {}]
  %s4 = inlined_call_operand.hbm [shape: bf16[6272,128], index: 4, kind: output, shape index: {}]
  %s5 = sld [smem:[#allocation0]]
  $region49: #{tpu_custom_call.1} parent=0
    _
  %s7 = ssub.s32 1, %s5
  %s8 = scalar_select 0, %s7, %s5
  $region1: #{tpu_custom_call.1} parent=0
    #allocation2 [shape = 'u8[802816]{0}', space=vmem, size = 0xc4000, scoped, tag = 'output window, operand 0']
    #allocation3 [shape = 's32[2]{0}', space=sflag, size = 0x8, scoped, tag = 'scoped memory for tpu_custom_call.1']
    %9 = vsyncpa [#allocation3], 0
    %s10 = scalar_lea.sflag [#allocation3], 1
    %11 = vsyncpa %s10, 0
    loop: start=0, step=1, limit=6
    $region2: #{tpu_custom_call.1} parent=1 // loop_pre_header
      _
    $region3: #{tpu_custom_call.1} parent=1 // loop_header
      %s13 = sphi 0, %s17
      %p14 = scmp.ge.s32.totalorder %s13, 6
      %s23 = sphi 0, %s25
      %s26 = sphi 0, %s23
      %s27 = sphi 0, %s26
      %s43 = sphi 0, %s27
      %s47 = sphi 0, %s47
      %s49 = sphi 0, %s47
      %s50 = sphi 0, %s49
      %s64 = sphi 0, %s50
      %s68 = sphi 0, %s68
      %s70 = sphi 0, %s68
      %s71 = sphi 0, %s70
      %s85 = sphi 0, %s71
      %s89 = sphi 0, %s89
      %s91 = sphi 0, %s89
      %s92 = sphi 0, %s91
      %s106 = sphi 0, %s92
      %s112 = sphi 0, %s114
      %s115 = sphi 0, %s112
      %s116 = sphi 0, %s115
      %s132 = sphi 0, %s116
    $region4: #{tpu_custom_call.1} parent=1 // loop_header_branch
      %16 = sbr.rel (%p14) target = $region8
    $region5: #{tpu_custom_call.1} parent=1 // loop_body
      %s18 = ssub.s32 %s13, 1
      %s19 = ssub.s32 %s13, 2
      %s20 = sadd.s32 %s13, 1
      %s21 = ssub.s32 %s13, %s20
      %p22 = scmp.eq.s32.totalorder %s21, 0
      %s24 = sadd.s32 %s23, 1
      %s25 = scalar_select %p22, %s23, %s24
      %p28 = pneg %p22
      %p29 = scmp.eq.s32.totalorder %s13, 3
      %p30 = por %p28, %p29
      %p31 = scmp.ne.s32.totalorder %s23, %s26
      %p32 = scmp.eq.s32.totalorder %s13, 0
      %p33 = por %p31, %p32
      %p34 = scmp.ne.s32.totalorder %s23, %s26
      %p35 = scmp.eq.s32.totalorder %s18, 3
      %p36 = por %p34, %p35
      %p37 = scmp.ne.s32.totalorder %s26, %s27
      %p38 = scmp.eq.s32.totalorder %s18, 0
      %p39 = por %p37, %p38
      %p40 = scmp.ne.s32.totalorder %s26, %s27
      %p41 = scmp.eq.s32.totalorder %s19, 3
      %p42 = por %p40, %p41
      %p44 = scmp.ne.s32.totalorder %s27, %s43
      %p45 = scmp.eq.s32.totalorder %s19, 0
      %p46 = por %p44, %p45
      %s48 = sadd.s32 %s47, 1
      %p51 = scmp.eq.s32.totalorder %s13, 3
      %p52 = scmp.ne.s32.totalorder %s47, %s49
      %p53 = scmp.eq.s32.totalorder %s13, 0
      %p54 = por %p52, %p53
      %p55 = scmp.ne.s32.totalorder %s47, %s49
      %p56 = scmp.eq.s32.totalorder %s18, 3
      %p57 = por %p55, %p56
      %p58 = scmp.ne.s32.totalorder %s49, %s50
      %p59 = scmp.eq.s32.totalorder %s18, 0
      %p60 = por %p58, %p59
      %p61 = scmp.ne.s32.totalorder %s49, %s50
      %p62 = scmp.eq.s32.totalorder %s19, 3
      %p63 = por %p61, %p62
      %p65 = scmp.ne.s32.totalorder %s50, %s64
      %p66 = scmp.eq.s32.totalorder %s19, 0
      %p67 = por %p65, %p66
      %s69 = sadd.s32 %s68, 1
      %p72 = scmp.eq.s32.totalorder %s13, 3
      %p73 = scmp.ne.s32.totalorder %s68, %s70
      %p74 = scmp.eq.s32.totalorder %s13, 0
      %p75 = por %p73, %p74
      %p76 = scmp.ne.s32.totalorder %s68, %s70
      %p77 = scmp.eq.s32.totalorder %s18, 3
      %p78 = por %p76, %p77
      %p79 = scmp.ne.s32.totalorder %s70, %s71
      %p80 = scmp.eq.s32.totalorder %s18, 0
      %p81 = por %p79, %p80
      %p82 = scmp.ne.s32.totalorder %s70, %s71
      %p83 = scmp.eq.s32.totalorder %s19, 3
      %p84 = por %p82, %p83
      %p86 = scmp.ne.s32.totalorder %s71, %s85
      %p87 = scmp.eq.s32.totalorder %s19, 0
      %p88 = por %p86, %p87
      %s90 = sadd.s32 %s89, 1
      %p93 = scmp.eq.s32.totalorder %s13, 3
      %p94 = scmp.ne.s32.totalorder %s89, %s91
      %p95 = scmp.eq.s32.totalorder %s13, 0
      %p96 = por %p94, %p95
      %p97 = scmp.ne.s32.totalorder %s89, %s91
      %p98 = scmp.eq.s32.totalorder %s18, 3
      %p99 = por %p97, %p98
      %p100 = scmp.ne.s32.totalorder %s91, %s92
      %p101 = scmp.eq.s32.totalorder %s18, 0
      %p102 = por %p100, %p101
      %p103 = scmp.ne.s32.totalorder %s91, %s92
      %p104 = scmp.eq.s32.totalorder %s19, 3
      %p105 = por %p103, %p104
      %p107 = scmp.ne.s32.totalorder %s92, %s106
      %p108 = scmp.eq.s32.totalorder %s19, 0
      %p109 = por %p107, %p108
      %s110 = ssub.s32 %s13, %s20
      %p111 = scmp.eq.s32.totalorder %s110, 0
      %s113 = sadd.s32 %s112, 1
      %s114 = scalar_select %p111, %s112, %s113
      %p117 = pneg %p111
      %p118 = scmp.eq.s32.totalorder %s13, 3
      %p119 = por %p117, %p118
      %p120 = scmp.ne.s32.totalorder %s112, %s115
      %p121 = scmp.eq.s32.totalorder %s13, 0
      %p122 = por %p120, %p121
      %p123 = scmp.ne.s32.totalorder %s112, %s115
      %p124 = scmp.eq.s32.totalorder %s18, 3
      %p125 = por %p123, %p124
      %p126 = scmp.ne.s32.totalorder %s115, %s116
      %p127 = scmp.eq.s32.totalorder %s18, 0
      %p128 = por %p126, %p127
      %p129 = scmp.ne.s32.totalorder %s115, %s116
      %p130 = scmp.eq.s32.totalorder %s19, 3
      %p131 = por %p129, %p130
      %p133 = scmp.ne.s32.totalorder %s116, %s132
      %p134 = scmp.eq.s32.totalorder %s19, 0
      %p135 = por %p133, %p134
      %p136 = scmp.le.s32.totalorder 1, %s13
      %p137 = scmp.lt.s32.totalorder %s13, 5
      %p138 = pnand %p136, %p137
      %p139 = pneg %p138
      // Predicated region
      $region9: #{tpu_custom_call.1} parent=5 // pred_check
        _
      $region10: #{tpu_custom_call.1} parent=5 // pred_check_branch
        %141 = sbr.rel (%p138) target = $region12
      $region11: #{tpu_custom_call.1} parent=5 // pred_region
        %s142 = ssub.s32 %s13, 1
        // Predicated region
        $region13: #{tpu_custom_call.1} parent=11 // pred_check
          %p143 = pneg %p60
        $region14: #{tpu_custom_call.1} parent=11 // pred_check_branch
          %145 = sbr.rel (%p143) target = $region16
        $region15: #{tpu_custom_call.1} parent=11 // pred_region
          _
        $region16: #{tpu_custom_call.1} parent=11 // pred_fallthru
          _
        // Predicated region
        $region17: #{tpu_custom_call.1} parent=11 // pred_check
          %p146 = pneg %p81
        $region18: #{tpu_custom_call.1} parent=11 // pred_check_branch
          %148 = sbr.rel (%p146) target = $region20
        $region19: #{tpu_custom_call.1} parent=11 // pred_region
          _
        $region20: #{tpu_custom_call.1} parent=11 // pred_fallthru
          _
        // Predicated region
        $region21: #{tpu_custom_call.1} parent=11 // pred_check
          %p149 = pneg %p102
        $region22: #{tpu_custom_call.1} parent=11 // pred_check_branch
          %151 = sbr.rel (%p149) target = $region24
        $region23: #{tpu_custom_call.1} parent=11 // pred_region
          _
        $region24: #{tpu_custom_call.1} parent=11 // pred_fallthru
          _
      $region12: #{tpu_custom_call.1} parent=5 // pred_fallthru
        _
      %p152 = scmp.lt.s32.totalorder %s13, 4
      // Predicated region
      $region25: #{tpu_custom_call.1} parent=5 // pred_check
        %p153 = pneg %p152
      $region26: #{tpu_custom_call.1} parent=5 // pred_check_branch
        %155 = sbr.rel (%p153) target = $region28
      $region27: #{tpu_custom_call.1} parent=5 // pred_region
        // Predicated region
        $region29: #{tpu_custom_call.1} parent=27 // pred_check
          %p156 = pneg %p33
        $region30: #{tpu_custom_call.1} parent=27 // pred_check_branch
          %158 = sbr.rel (%p156) target = $region32
        $region31: #{tpu_custom_call.1} parent=27 // pred_region
          %s159 = smul.u32 196, %s13
          %p160 = scmp.lt.s32.totalorder %s159, 783
          %s161 = scalar_select %p160, %s159, 783
          %s162 = smul.addr %s161, 4
          %s163 = scalar_lea.vmem %s0, %s162
          %s164 = smul.u32 196, %s13
        $region32: #{tpu_custom_call.1} parent=27 // pred_fallthru
          _
      $region28: #{tpu_custom_call.1} parent=5 // pred_fallthru
        _
      %p165 = scmp.le.s32.totalorder 1, %s13
      %p166 = scmp.lt.s32.totalorder %s13, 5
      %p167 = pnand %p165, %p166
      %p168 = pneg %p167
      // Predicated region
      $region33: #{tpu_custom_call.1} parent=5 // pred_check
        _
      $region34: #{tpu_custom_call.1} parent=5 // pred_check_branch
        %170 = sbr.rel (%p167) target = $region36
      $region35: #{tpu_custom_call.1} parent=5 // pred_region
        %s171 = ssub.s32 %s13, 1
        %s172 = smul.u32 196, %s18
        %p173 = scmp.lt.s32.totalorder %s172, 783
        %s174 = scalar_select %p173, %s172, 783
        %s175 = smul.addr %s174, 4
        %s176 = scalar_lea.vmem %s0, %s175
        %p177 = pneg %p39
        %p178 = pneg %p36
        %p179 = pneg %p60
        %p180 = pneg %p57
        %p181 = pneg %p81
        %p182 = pneg %p78
        %p183 = pneg %p102
        %p184 = pneg %p99
        %p185 = pneg %p128
        %p186 = pneg %p125
        %s187 = sand.u32 %s115, 1
        %s188 = scalar_lea.sflag [#allocation3], %s187
        %s189 = sand.u32 %s115, 1
        %s190 = smul.addr %s189, 784
        %s191 = scalar_lea.vmem [#allocation2], %s190
        %s192 = smul.u32 196, %s18
        %p193 = scmp.lt.s32.totalorder %s192, 783
        %s194 = scalar_select %p193, %s192, 783
        %s195 = smul.addr %s194, 4
        %s196 = scalar_lea.vmem %s0, %s195
        %s197 = smul.u32 196, %s18
        %s198 = smul.u32 196, %s18
        %v200 = vld [vmem:[%s196] sm:$0xf]
        %v201 = vld [vmem:[%s196 + $0x4] sm:$0xf]
        %v202 = vld [vmem:[%s196 + $0x8] sm:$0xf]
        %v203 = vld [vmem:[%s196 + $0xc] sm:$0xf]
        %v204 = vld [vmem:[%s196 + $0x10] sm:$0xf]
        %v205 = vld [vmem:[%s196 + $0x14] sm:$0xf]
        %v206 = vld [vmem:[%s196 + $0x18] sm:$0xf]
        %v207 = vld [vmem:[%s196 + $0x1c] sm:$0xf]
        %v208 = vld [vmem:[%s196 + $0x20] sm:$0xf]
        %v209 = vld [vmem:[%s196 + $0x24] sm:$0xf]
        %v210 = vld [vmem:[%s196 + $0x28] sm:$0xf]
        %v211 = vld [vmem:[%s196 + $0x2c] sm:$0xf]
        %v212 = vld [vmem:[%s196 + $0x30] sm:$0xf]
        %v213 = vld [vmem:[%s196 + $0x34] sm:$0xf]
        %v214 = vld [vmem:[%s196 + $0x38] sm:$0xf]
        %v215 = vld [vmem:[%s196 + $0x3c] sm:$0xf]
        %v216 = vld [vmem:[%s196 + $0x40] sm:$0xf]
        %v217 = vld [vmem:[%s196 + $0x44] sm:$0xf]
        %v218 = vld [vmem:[%s196 + $0x48] sm:$0xf]
        %v219 = vld [vmem:[%s196 + $0x4c] sm:$0xf]
        %v220 = vld [vmem:[%s196 + $0x50] sm:$0xf]
        %v221 = vld [vmem:[%s196 + $0x54] sm:$0xf]
        %v222 = vld [vmem:[%s196 + $0x58] sm:$0xf]
        %v223 = vld [vmem:[%s196 + $0x5c] sm:$0xf]
        %v224 = vld [vmem:[%s196 + $0x60] sm:$0xf]
        %v225 = vld [vmem:[%s196 + $0x64] sm:$0xf]
        %v226 = vld [vmem:[%s196 + $0x68] sm:$0xf]
        %v227 = vld [vmem:[%s196 + $0x6c] sm:$0xf]
        %v228 = vld [vmem:[%s196 + $0x70] sm:$0xf]
        %v229 = vld [vmem:[%s196 + $0x74] sm:$0xf]
        %v230 = vld [vmem:[%s196 + $0x78] sm:$0xf]
        %v231 = vld [vmem:[%s196 + $0x7c] sm:$0xf]
        %v232 = vld [vmem:[%s196 + $0x80] sm:$0xf]
        %v233 = vld [vmem:[%s196 + $0x84] sm:$0xf]
        %v234 = vld [vmem:[%s196 + $0x88] sm:$0xf]
        %v235 = vld [vmem:[%s196 + $0x8c] sm:$0xf]
        %v236 = vld [vmem:[%s196 + $0x90] sm:$0xf]
        %v237 = vld [vmem:[%s196 + $0x94] sm:$0xf]
        %v238 = vld [vmem:[%s196 + $0x98] sm:$0xf]
        %v239 = vld [vmem:[%s196 + $0x9c] sm:$0xf]
        %v240 = vld [vmem:[%s196 + $0xa0] sm:$0xf]
        %v241 = vld [vmem:[%s196 + $0xa4] sm:$0xf]
        %v242 = vld [vmem:[%s196 + $0xa8] sm:$0xf]
        %v243 = vld [vmem:[%s196 + $0xac] sm:$0xf]
        %v244 = vld [vmem:[%s196 + $0xb0] sm:$0xf]
        %v245 = vld [vmem:[%s196 + $0xb4] sm:$0xf]
        %v246 = vld [vmem:[%s196 + $0xb8] sm:$0xf]
        %v247 = vld [vmem:[%s196 + $0xbc] sm:$0xf]
        %v248 = vld [vmem:[%s196 + $0xc0] sm:$0xf]
        %v249 = vld [vmem:[%s196 + $0xc4] sm:$0xf]
        %v250 = vld [vmem:[%s196 + $0xc8] sm:$0xf]
        %v251 = vld [vmem:[%s196 + $0xcc] sm:$0xf]
        %v252 = vld [vmem:[%s196 + $0xd0] sm:$0xf]
        %v253 = vld [vmem:[%s196 + $0xd4] sm:$0xf]
        %v254 = vld [vmem:[%s196 + $0xd8] sm:$0xf]
        %v255 = vld [vmem:[%s196 + $0xdc] sm:$0xf]
        %v256 = vld [vmem:[%s196 + $0xe0] sm:$0xf]
        %v257 = vld [vmem:[%s196 + $0xe4] sm:$0xf]
        %v258 = vld [vmem:[%s196 + $0xe8] sm:$0xf]
        %v259 = vld [vmem:[%s196 + $0xec] sm:$0xf]
        %v260 = vld [vmem:[%s196 + $0xf0] sm:$0xf]
        %v261 = vld [vmem:[%s196 + $0xf4] sm:$0xf]
        %v262 = vld [vmem:[%s196 + $0xf8] sm:$0xf]
        %v263 = vld [vmem:[%s196 + $0xfc] sm:$0xf]
        %v264 = vld [vmem:[%s196 + $0x100] sm:$0xf]
        %v265 = vld [vmem:[%s196 + $0x104] sm:$0xf]
        %v266 = vld [vmem:[%s196 + $0x108] sm:$0xf]
        %v267 = vld [vmem:[%s196 + $0x10c] sm:$0xf]
        %v268 = vld [vmem:[%s196 + $0x110] sm:$0xf]
        %v269 = vld [vmem:[%s196 + $0x114] sm:$0xf]
        %v270 = vld [vmem:[%s196 + $0x118] sm:$0xf]
        %v271 = vld [vmem:[%s196 + $0x11c] sm:$0xf]
        %v272 = vld [vmem:[%s196 + $0x120] sm:$0xf]
        %v273 = vld [vmem:[%s196 + $0x124] sm:$0xf]
        %v274 = vld [vmem:[%s196 + $0x128] sm:$0xf]
        %v275 = vld [vmem:[%s196 + $0x12c] sm:$0xf]
        %v276 = vld [vmem:[%s196 + $0x130] sm:$0xf]
        %v277 = vld [vmem:[%s196 + $0x134] sm:$0xf]
        %v278 = vld [vmem:[%s196 + $0x138] sm:$0xf]
        %v279 = vld [vmem:[%s196 + $0x13c] sm:$0xf]
        %v280 = vld [vmem:[%s196 + $0x140] sm:$0xf]
        %v281 = vld [vmem:[%s196 + $0x144] sm:$0xf]
        %v282 = vld [vmem:[%s196 + $0x148] sm:$0xf]
        %v283 = vld [vmem:[%s196 + $0x14c] sm:$0xf]
        %v284 = vld [vmem:[%s196 + $0x150] sm:$0xf]
        %v285 = vld [vmem:[%s196 + $0x154] sm:$0xf]
        %v286 = vld [vmem:[%s196 + $0x158] sm:$0xf]
        %v287 = vld [vmem:[%s196 + $0x15c] sm:$0xf]
        %v288 = vld [vmem:[%s196 + $0x160] sm:$0xf]
        %v289 = vld [vmem:[%s196 + $0x164] sm:$0xf]
        %v290 = vld [vmem:[%s196 + $0x168] sm:$0xf]
        %v291 = vld [vmem:[%s196 + $0x16c] sm:$0xf]
        %v292 = vld [vmem:[%s196 + $0x170] sm:$0xf]
        %v293 = vld [vmem:[%s196 + $0x174] sm:$0xf]
        %v294 = vld [vmem:[%s196 + $0x178] sm:$0xf]
        %v295 = vld [vmem:[%s196 + $0x17c] sm:$0xf]
        %v296 = vld [vmem:[%s196 + $0x180] sm:$0xf]
        %v297 = vld [vmem:[%s196 + $0x184] sm:$0xf]
        %v298 = vld [vmem:[%s196 + $0x188] sm:$0xf]
        %v299 = vld [vmem:[%s196 + $0x18c] sm:$0xf]
        %v300 = vld [vmem:[%s196 + $0x190] sm:$0xf]
        %v301 = vld [vmem:[%s196 + $0x194] sm:$0xf]
        %v302 = vld [vmem:[%s196 + $0x198] sm:$0xf]
        %v303 = vld [vmem:[%s196 + $0x19c] sm:$0xf]
        %v304 = vld [vmem:[%s196 + $0x1a0] sm:$0xf]
        %v305 = vld [vmem:[%s196 + $0x1a4] sm:$0xf]
        %v306 = vld [vmem:[%s196 + $0x1a8] sm:$0xf]
        %v307 = vld [vmem:[%s196 + $0x1ac] sm:$0xf]
        %v308 = vld [vmem:[%s196 + $0x1b0] sm:$0xf]
        %v309 = vld [vmem:[%s196 + $0x1b4] sm:$0xf]
        %v310 = vld [vmem:[%s196 + $0x1b8] sm:$0xf]
        %v311 = vld [vmem:[%s196 + $0x1bc] sm:$0xf]
        %v312 = vld [vmem:[%s196 + $0x1c0] sm:$0xf]
        %v313 = vld [vmem:[%s196 + $0x1c4] sm:$0xf]
        %v314 = vld [vmem:[%s196 + $0x1c8] sm:$0xf]
        %v315 = vld [vmem:[%s196 + $0x1cc] sm:$0xf]
        %v316 = vld [vmem:[%s196 + $0x1d0] sm:$0xf]
        %v317 = vld [vmem:[%s196 + $0x1d4] sm:$0xf]
        %v318 = vld [vmem:[%s196 + $0x1d8] sm:$0xf]
        %v319 = vld [vmem:[%s196 + $0x1dc] sm:$0xf]
        %v320 = vld [vmem:[%s196 + $0x1e0] sm:$0xf]
        %v321 = vld [vmem:[%s196 + $0x1e4] sm:$0xf]
        %v322 = vld [vmem:[%s196 + $0x1e8] sm:$0xf]
        %v323 = vld [vmem:[%s196 + $0x1ec] sm:$0xf]
        %v324 = vld [vmem:[%s196 + $0x1f0] sm:$0xf]
        %v325 = vld [vmem:[%s196 + $0x1f4] sm:$0xf]
        %v326 = vld [vmem:[%s196 + $0x1f8] sm:$0xf]
        %v327 = vld [vmem:[%s196 + $0x1fc] sm:$0xf]
        %v328 = vld [vmem:[%s196 + $0x200] sm:$0xf]
        %v329 = vld [vmem:[%s196 + $0x204] sm:$0xf]
        %v330 = vld [vmem:[%s196 + $0x208] sm:$0xf]
        %v331 = vld [vmem:[%s196 + $0x20c] sm:$0xf]
        %v332 = vld [vmem:[%s196 + $0x210] sm:$0xf]
        %v333 = vld [vmem:[%s196 + $0x214] sm:$0xf]
        %v334 = vld [vmem:[%s196 + $0x218] sm:$0xf]
        %v335 = vld [vmem:[%s196 + $0x21c] sm:$0xf]
        %v336 = vld [vmem:[%s196 + $0x220] sm:$0xf]
        %v337 = vld [vmem:[%s196 + $0x224] sm:$0xf]
        %v338 = vld [vmem:[%s196 + $0x228] sm:$0xf]
        %v339 = vld [vmem:[%s196 + $0x22c] sm:$0xf]
        %v340 = vld [vmem:[%s196 + $0x230] sm:$0xf]
        %v341 = vld [vmem:[%s196 + $0x234] sm:$0xf]
        %v342 = vld [vmem:[%s196 + $0x238] sm:$0xf]
        %v343 = vld [vmem:[%s196 + $0x23c] sm:$0xf]
        %v344 = vld [vmem:[%s196 + $0x240] sm:$0xf]
        %v345 = vld [vmem:[%s196 + $0x244] sm:$0xf]
        %v346 = vld [vmem:[%s196 + $0x248] sm:$0xf]
        %v347 = vld [vmem:[%s196 + $0x24c] sm:$0xf]
        %v348 = vld [vmem:[%s196 + $0x250] sm:$0xf]
        %v349 = vld [vmem:[%s196 + $0x254] sm:$0xf]
        %v350 = vld [vmem:[%s196 + $0x258] sm:$0xf]
        %v351 = vld [vmem:[%s196 + $0x25c] sm:$0xf]
        %v352 = vld [vmem:[%s196 + $0x260] sm:$0xf]
        %v353 = vld [vmem:[%s196 + $0x264] sm:$0xf]
        %v354 = vld [vmem:[%s196 + $0x268] sm:$0xf]
        %v355 = vld [vmem:[%s196 + $0x26c] sm:$0xf]
        %v356 = vld [vmem:[%s196 + $0x270] sm:$0xf]
        %v357 = vld [vmem:[%s196 + $0x274] sm:$0xf]
        %v358 = vld [vmem:[%s196 + $0x278] sm:$0xf]
        %v359 = vld [vmem:[%s196 + $0x27c] sm:$0xf]
        %v360 = vld [vmem:[%s196 + $0x280] sm:$0xf]
        %v361 = vld [vmem:[%s196 + $0x284] sm:$0xf]
        %v362 = vld [vmem:[%s196 + $0x288] sm:$0xf]
        %v363 = vld [vmem:[%s196 + $0x28c] sm:$0xf]
        %v364 = vld [vmem:[%s196 + $0x290] sm:$0xf]
        %v365 = vld [vmem:[%s196 + $0x294] sm:$0xf]
        %v366 = vld [vmem:[%s196 + $0x298] sm:$0xf]
        %v367 = vld [vmem:[%s196 + $0x29c] sm:$0xf]
        %v368 = vld [vmem:[%s196 + $0x2a0] sm:$0xf]
        %v369 = vld [vmem:[%s196 + $0x2a4] sm:$0xf]
        %v370 = vld [vmem:[%s196 + $0x2a8] sm:$0xf]
        %v371 = vld [vmem:[%s196 + $0x2ac] sm:$0xf]
        %v372 = vld [vmem:[%s196 + $0x2b0] sm:$0xf]
        %v373 = vld [vmem:[%s196 + $0x2b4] sm:$0xf]
        %v374 = vld [vmem:[%s196 + $0x2b8] sm:$0xf]
        %v375 = vld [vmem:[%s196 + $0x2bc] sm:$0xf]
        %v376 = vld [vmem:[%s196 + $0x2c0] sm:$0xf]
        %v377 = vld [vmem:[%s196 + $0x2c4] sm:$0xf]
        %v378 = vld [vmem:[%s196 + $0x2c8] sm:$0xf]
        %v379 = vld [vmem:[%s196 + $0x2cc] sm:$0xf]
        %v380 = vld [vmem:[%s196 + $0x2d0] sm:$0xf]
        %v381 = vld [vmem:[%s196 + $0x2d4] sm:$0xf]
        %v382 = vld [vmem:[%s196 + $0x2d8] sm:$0xf]
        %v383 = vld [vmem:[%s196 + $0x2dc] sm:$0xf]
        %v384 = vld [vmem:[%s196 + $0x2e0] sm:$0xf]
        %v385 = vld [vmem:[%s196 + $0x2e4] sm:$0xf]
        %v386 = vld [vmem:[%s196 + $0x2e8] sm:$0xf]
        %v387 = vld [vmem:[%s196 + $0x2ec] sm:$0xf]
        %v388 = vld [vmem:[%s196 + $0x2f0] sm:$0xf]
        %v389 = vld [vmem:[%s196 + $0x2f4] sm:$0xf]
        %v390 = vld [vmem:[%s196 + $0x2f8] sm:$0xf]
        %v391 = vld [vmem:[%s196 + $0x2fc] sm:$0xf]
        %v392 = vld [vmem:[%s196 + $0x300] sm:$0xf]
        %v393 = vld [vmem:[%s196 + $0x304] sm:$0xf]
        %v394 = vld [vmem:[%s196 + $0x308] sm:$0xf]
        %v395 = vld [vmem:[%s196 + $0x30c] sm:$0xf]
        %v396 = vld [vmem:[%s1] sm:$0xf]
        %v397 = vld [vmem:[%s1 + $0x4] sm:$0xf]
        %v398 = vld [vmem:[%s1 + $0x8] sm:$0xf]
        %v399 = vld [vmem:[%s1 + $0xc] sm:$0x3]
        %v400 = vld [vmem:[%s2] sm:$0x1]
        %v402 = vperm.slane %v400, 0
        %v600 = vunpack.c.l.b16 %v200
        %v601 = vunpack.c.l.b16 %v201
        %v602 = vunpack.c.l.b16 %v202
        %v603 = vunpack.c.l.b16 %v203
        %v604 = vunpack.c.l.b16 %v204
        %v605 = vunpack.c.l.b16 %v205
        %v606 = vunpack.c.l.b16 %v206
        %v607 = vunpack.c.l.b16 %v207
        %v608 = vunpack.c.l.b16 %v208
        %v609 = vunpack.c.l.b16 %v209
        %v610 = vunpack.c.l.b16 %v210
        %v611 = vunpack.c.l.b16 %v211
        %v612 = vunpack.c.l.b16 %v212
        %v613 = vunpack.c.l.b16 %v213
        %v614 = vunpack.c.l.b16 %v214
        %v615 = vunpack.c.l.b16 %v215
        %v616 = vunpack.c.l.b16 %v216
        %v617 = vunpack.c.l.b16 %v217
        %v618 = vunpack.c.l.b16 %v218
        %v619 = vunpack.c.l.b16 %v219
        %v620 = vunpack.c.l.b16 %v220
        %v621 = vunpack.c.l.b16 %v221
        %v622 = vunpack.c.l.b16 %v222
        %v623 = vunpack.c.l.b16 %v223
        %v624 = vunpack.c.l.b16 %v224
        %v625 = vunpack.c.l.b16 %v225
        %v626 = vunpack.c.l.b16 %v226
        %v627 = vunpack.c.l.b16 %v227
        %v628 = vunpack.c.l.b16 %v228
        %v629 = vunpack.c.l.b16 %v229
        %v630 = vunpack.c.l.b16 %v230
        %v631 = vunpack.c.l.b16 %v231
        %v632 = vunpack.c.l.b16 %v232
        %v633 = vunpack.c.l.b16 %v233
        %v634 = vunpack.c.l.b16 %v234
        %v635 = vunpack.c.l.b16 %v235
        %v636 = vunpack.c.l.b16 %v236
        %v637 = vunpack.c.l.b16 %v237
        %v638 = vunpack.c.l.b16 %v238
        %v639 = vunpack.c.l.b16 %v239
        %v640 = vunpack.c.l.b16 %v240
        %v641 = vunpack.c.l.b16 %v241
        %v642 = vunpack.c.l.b16 %v242
        %v643 = vunpack.c.l.b16 %v243
        %v644 = vunpack.c.l.b16 %v244
        %v645 = vunpack.c.l.b16 %v245
        %v646 = vunpack.c.l.b16 %v246
        %v647 = vunpack.c.l.b16 %v247
        %v648 = vunpack.c.l.b16 %v248
        %v649 = vunpack.c.l.b16 %v249
        %v650 = vunpack.c.l.b16 %v250
        %v651 = vunpack.c.l.b16 %v251
        %v652 = vunpack.c.l.b16 %v252
        %v653 = vunpack.c.l.b16 %v253
        %v654 = vunpack.c.l.b16 %v254
        %v655 = vunpack.c.l.b16 %v255
        %v656 = vunpack.c.l.b16 %v256
        %v657 = vunpack.c.l.b16 %v257
        %v658 = vunpack.c.l.b16 %v258
        %v659 = vunpack.c.l.b16 %v259
        %v660 = vunpack.c.l.b16 %v260
        %v661 = vunpack.c.l.b16 %v261
        %v662 = vunpack.c.l.b16 %v262
        %v663 = vunpack.c.l.b16 %v263
        %v664 = vunpack.c.l.b16 %v264
        %v665 = vunpack.c.l.b16 %v265
        %v666 = vunpack.c.l.b16 %v266
        %v667 = vunpack.c.l.b16 %v267
        %v668 = vunpack.c.l.b16 %v268
        %v669 = vunpack.c.l.b16 %v269
        %v670 = vunpack.c.l.b16 %v270
        %v671 = vunpack.c.l.b16 %v271
        %v672 = vunpack.c.l.b16 %v272
        %v673 = vunpack.c.l.b16 %v273
        %v674 = vunpack.c.l.b16 %v274
        %v675 = vunpack.c.l.b16 %v275
        %v676 = vunpack.c.l.b16 %v276
        %v677 = vunpack.c.l.b16 %v277
        %v678 = vunpack.c.l.b16 %v278
        %v679 = vunpack.c.l.b16 %v279
        %v680 = vunpack.c.l.b16 %v280
        %v681 = vunpack.c.l.b16 %v281
        %v682 = vunpack.c.l.b16 %v282
        %v683 = vunpack.c.l.b16 %v283
        %v684 = vunpack.c.l.b16 %v284
        %v685 = vunpack.c.l.b16 %v285
        %v686 = vunpack.c.l.b16 %v286
        %v687 = vunpack.c.l.b16 %v287
        %v688 = vunpack.c.l.b16 %v288
        %v689 = vunpack.c.l.b16 %v289
        %v690 = vunpack.c.l.b16 %v290
        %v691 = vunpack.c.l.b16 %v291
        %v692 = vunpack.c.l.b16 %v292
        %v693 = vunpack.c.l.b16 %v293
        %v694 = vunpack.c.l.b16 %v294
        %v695 = vunpack.c.l.b16 %v295
        %v696 = vunpack.c.l.b16 %v296
        %v697 = vunpack.c.l.b16 %v297
        %v698 = vunpack.c.l.b16 %v298
        %v699 = vunpack.c.l.b16 %v299
        %v700 = vunpack.c.l.b16 %v300
        %v701 = vunpack.c.l.b16 %v301
        %v702 = vunpack.c.l.b16 %v302
        %v703 = vunpack.c.l.b16 %v303
        %v704 = vunpack.c.l.b16 %v304
        %v705 = vunpack.c.l.b16 %v305
        %v706 = vunpack.c.l.b16 %v306
        %v707 = vunpack.c.l.b16 %v307
        %v708 = vunpack.c.l.b16 %v308
        %v709 = vunpack.c.l.b16 %v309
        %v710 = vunpack.c.l.b16 %v310
        %v711 = vunpack.c.l.b16 %v311
        %v712 = vunpack.c.l.b16 %v312
        %v713 = vunpack.c.l.b16 %v313
        %v714 = vunpack.c.l.b16 %v314
        %v715 = vunpack.c.l.b16 %v315
        %v716 = vunpack.c.l.b16 %v316
        %v717 = vunpack.c.l.b16 %v317
        %v718 = vunpack.c.l.b16 %v318
        %v719 = vunpack.c.l.b16 %v319
        %v720 = vunpack.c.l.b16 %v320
        %v721 = vunpack.c.l.b16 %v321
        %v722 = vunpack.c.l.b16 %v322
        %v723 = vunpack.c.l.b16 %v323
        %v724 = vunpack.c.l.b16 %v324
        %v725 = vunpack.c.l.b16 %v325
        %v726 = vunpack.c.l.b16 %v326
        %v727 = vunpack.c.l.b16 %v327
        %v728 = vunpack.c.l.b16 %v328
        %v729 = vunpack.c.l.b16 %v329
        %v730 = vunpack.c.l.b16 %v330
        %v731 = vunpack.c.l.b16 %v331
        %v732 = vunpack.c.l.b16 %v332
        %v733 = vunpack.c.l.b16 %v333
        %v734 = vunpack.c.l.b16 %v334
        %v735 = vunpack.c.l.b16 %v335
        %v736 = vunpack.c.l.b16 %v336
        %v737 = vunpack.c.l.b16 %v337
        %v738 = vunpack.c.l.b16 %v338
        %v739 = vunpack.c.l.b16 %v339
        %v740 = vunpack.c.l.b16 %v340
        %v741 = vunpack.c.l.b16 %v341
        %v742 = vunpack.c.l.b16 %v342
        %v743 = vunpack.c.l.b16 %v343
        %v744 = vunpack.c.l.b16 %v344
        %v745 = vunpack.c.l.b16 %v345
        %v746 = vunpack.c.l.b16 %v346
        %v747 = vunpack.c.l.b16 %v347
        %v748 = vunpack.c.l.b16 %v348
        %v749 = vunpack.c.l.b16 %v349
        %v750 = vunpack.c.l.b16 %v350
        %v751 = vunpack.c.l.b16 %v351
        %v752 = vunpack.c.l.b16 %v352
        %v753 = vunpack.c.l.b16 %v353
        %v754 = vunpack.c.l.b16 %v354
        %v755 = vunpack.c.l.b16 %v355
        %v756 = vunpack.c.l.b16 %v356
        %v757 = vunpack.c.l.b16 %v357
        %v758 = vunpack.c.l.b16 %v358
        %v759 = vunpack.c.l.b16 %v359
        %v760 = vunpack.c.l.b16 %v360
        %v761 = vunpack.c.l.b16 %v361
        %v762 = vunpack.c.l.b16 %v362
        %v763 = vunpack.c.l.b16 %v363
        %v764 = vunpack.c.l.b16 %v364
        %v765 = vunpack.c.l.b16 %v365
        %v766 = vunpack.c.l.b16 %v366
        %v767 = vunpack.c.l.b16 %v367
        %v768 = vunpack.c.l.b16 %v368
        %v769 = vunpack.c.l.b16 %v369
        %v770 = vunpack.c.l.b16 %v370
        %v771 = vunpack.c.l.b16 %v371
        %v772 = vunpack.c.l.b16 %v372
        %v773 = vunpack.c.l.b16 %v373
        %v774 = vunpack.c.l.b16 %v374
        %v775 = vunpack.c.l.b16 %v375
        %v776 = vunpack.c.l.b16 %v376
        %v777 = vunpack.c.l.b16 %v377
        %v778 = vunpack.c.l.b16 %v378
        %v779 = vunpack.c.l.b16 %v379
        %v780 = vunpack.c.l.b16 %v380
        %v781 = vunpack.c.l.b16 %v381
        %v782 = vunpack.c.l.b16 %v382
        %v783 = vunpack.c.l.b16 %v383
        %v784 = vunpack.c.l.b16 %v384
        %v785 = vunpack.c.l.b16 %v385
        %v786 = vunpack.c.l.b16 %v386
        %v787 = vunpack.c.l.b16 %v387
        %v788 = vunpack.c.l.b16 %v388
        %v789 = vunpack.c.l.b16 %v389
        %v790 = vunpack.c.l.b16 %v390
        %v791 = vunpack.c.l.b16 %v391
        %v792 = vunpack.c.l.b16 %v392
        %v793 = vunpack.c.l.b16 %v393
        %v794 = vunpack.c.l.b16 %v394
        %v795 = vunpack.c.l.b16 %v395
        %v796 = vpack.c.b16 %v601, %v600
        %v797 = vpack.c.b16 %v603, %v602
        %v798 = vpack.c.b16 %v605, %v604
        %v799 = vpack.c.b16 %v607, %v606
        %v800 = vpack.c.b16 %v609, %v608
        %v801 = vpack.c.b16 %v611, %v610
        %v802 = vpack.c.b16 %v613, %v612
        %v803 = vpack.c.b16 %v615, %v614
        %v804 = vpack.c.b16 %v617, %v616
        %v805 = vpack.c.b16 %v619, %v618
        %v806 = vpack.c.b16 %v621, %v620
        %v807 = vpack.c.b16 %v623, %v622
        %v808 = vpack.c.b16 %v625, %v624
        %v809 = vpack.c.b16 %v627, %v626
        %v810 = vpack.c.b16 %v629, %v628
        %v811 = vpack.c.b16 %v631, %v630
        %v812 = vpack.c.b16 %v633, %v632
        %v813 = vpack.c.b16 %v635, %v634
        %v814 = vpack.c.b16 %v637, %v636
        %v815 = vpack.c.b16 %v639, %v638
        %v816 = vpack.c.b16 %v641, %v640
        %v817 = vpack.c.b16 %v643, %v642
        %v818 = vpack.c.b16 %v645, %v644
        %v819 = vpack.c.b16 %v647, %v646
        %v820 = vpack.c.b16 %v649, %v648
        %v821 = vpack.c.b16 %v651, %v650
        %v822 = vpack.c.b16 %v653, %v652
        %v823 = vpack.c.b16 %v655, %v654
        %v824 = vpack.c.b16 %v657, %v656
        %v825 = vpack.c.b16 %v659, %v658
        %v826 = vpack.c.b16 %v661, %v660
        %v827 = vpack.c.b16 %v663, %v662
        %v828 = vpack.c.b16 %v665, %v664
        %v829 = vpack.c.b16 %v667, %v666
        %v830 = vpack.c.b16 %v669, %v668
        %v831 = vpack.c.b16 %v671, %v670
        %v832 = vpack.c.b16 %v673, %v672
        %v833 = vpack.c.b16 %v675, %v674
        %v834 = vpack.c.b16 %v677, %v676
        %v835 = vpack.c.b16 %v679, %v678
        %v836 = vpack.c.b16 %v681, %v680
        %v837 = vpack.c.b16 %v683, %v682
        %v838 = vpack.c.b16 %v685, %v684
        %v839 = vpack.c.b16 %v687, %v686
        %v840 = vpack.c.b16 %v689, %v688
        %v841 = vpack.c.b16 %v691, %v690
        %v842 = vpack.c.b16 %v693, %v692
        %v843 = vpack.c.b16 %v695, %v694
        %v844 = vpack.c.b16 %v697, %v696
        %v845 = vpack.c.b16 %v699, %v698
        %v846 = vpack.c.b16 %v701, %v700
        %v847 = vpack.c.b16 %v703, %v702
        %v848 = vpack.c.b16 %v705, %v704
        %v849 = vpack.c.b16 %v707, %v706
        %v850 = vpack.c.b16 %v709, %v708
        %v851 = vpack.c.b16 %v711, %v710
        %v852 = vpack.c.b16 %v713, %v712
        %v853 = vpack.c.b16 %v715, %v714
        %v854 = vpack.c.b16 %v717, %v716
        %v855 = vpack.c.b16 %v719, %v718
        %v856 = vpack.c.b16 %v721, %v720
        %v857 = vpack.c.b16 %v723, %v722
        %v858 = vpack.c.b16 %v725, %v724
        %v859 = vpack.c.b16 %v727, %v726
        %v860 = vpack.c.b16 %v729, %v728
        %v861 = vpack.c.b16 %v731, %v730
        %v862 = vpack.c.b16 %v733, %v732
        %v863 = vpack.c.b16 %v735, %v734
        %v864 = vpack.c.b16 %v737, %v736
        %v865 = vpack.c.b16 %v739, %v738
        %v866 = vpack.c.b16 %v741, %v740
        %v867 = vpack.c.b16 %v743, %v742
        %v868 = vpack.c.b16 %v745, %v744
        %v869 = vpack.c.b16 %v747, %v746
        %v870 = vpack.c.b16 %v749, %v748
        %v871 = vpack.c.b16 %v751, %v750
        %v872 = vpack.c.b16 %v753, %v752
        %v873 = vpack.c.b16 %v755, %v754
        %v874 = vpack.c.b16 %v757, %v756
        %v875 = vpack.c.b16 %v759, %v758
        %v876 = vpack.c.b16 %v761, %v760
        %v877 = vpack.c.b16 %v763, %v762
        %v878 = vpack.c.b16 %v765, %v764
        %v879 = vpack.c.b16 %v767, %v766
        %v880 = vpack.c.b16 %v769, %v768
        %v881 = vpack.c.b16 %v771, %v770
        %v882 = vpack.c.b16 %v773, %v772
        %v883 = vpack.c.b16 %v775, %v774
        %v884 = vpack.c.b16 %v777, %v776
        %v885 = vpack.c.b16 %v779, %v778
        %v886 = vpack.c.b16 %v781, %v780
        %v887 = vpack.c.b16 %v783, %v782
        %v888 = vpack.c.b16 %v785, %v784
        %v889 = vpack.c.b16 %v787, %v786
        %v890 = vpack.c.b16 %v789, %v788
        %v891 = vpack.c.b16 %v791, %v790
        %v892 = vpack.c.b16 %v793, %v792
        %v893 = vpack.c.b16 %v795, %v794
        %v898 = vunpack.c.l.b16 %v396
        %v899 = vunpack.c.l.b16 %v397
        %v900 = vunpack.c.l.b16 %v398
        %v901 = vunpack.c.l.b16 %v399
        %v902 = vpack.c.b16 %v899, %v898
        %v903 = vpack.c.b16 %v901, %v900
        %vm905 = vcmask 220160
        %v907 = vsel %vm905, %v796, 0
        %v910 = vsel %vm905, %v797, 0
        %v913 = vsel %vm905, %v798, 0
        %v916 = vsel %vm905, %v799, 0
        %v919 = vsel %vm905, %v800, 0
        %v922 = vsel %vm905, %v801, 0
        %v925 = vsel %vm905, %v802, 0
        %v928 = vsel %vm905, %v803, 0
        %v931 = vsel %vm905, %v804, 0
        %v934 = vsel %vm905, %v805, 0
        %v937 = vsel %vm905, %v806, 0
        %v940 = vsel %vm905, %v807, 0
        %v943 = vsel %vm905, %v808, 0
        %v946 = vsel %vm905, %v809, 0
        %v949 = vsel %vm905, %v810, 0
        %v952 = vsel %vm905, %v811, 0
        %v955 = vsel %vm905, %v812, 0
        %v958 = vsel %vm905, %v813, 0
        %v961 = vsel %vm905, %v814, 0
        %v964 = vsel %vm905, %v815, 0
        %v967 = vsel %vm905, %v816, 0
        %v970 = vsel %vm905, %v817, 0
        %v973 = vsel %vm905, %v818, 0
        %v976 = vsel %vm905, %v819, 0
        %v979 = vsel %vm905, %v820, 0
        %v982 = vsel %vm905, %v821, 0
        %v985 = vsel %vm905, %v822, 0
        %v988 = vsel %vm905, %v823, 0
        %v991 = vsel %vm905, %v824, 0
        %v994 = vsel %vm905, %v825, 0
        %v997 = vsel %vm905, %v826, 0
        %v1000 = vsel %vm905, %v827, 0
        %v1003 = vsel %vm905, %v828, 0
        %v1006 = vsel %vm905, %v829, 0
        %v1009 = vsel %vm905, %v830, 0
        %v1012 = vsel %vm905, %v831, 0
        %v1015 = vsel %vm905, %v832, 0
        %v1018 = vsel %vm905, %v833, 0
        %v1021 = vsel %vm905, %v834, 0
        %v1024 = vsel %vm905, %v835, 0
        %v1027 = vsel %vm905, %v836, 0
        %v1030 = vsel %vm905, %v837, 0
        %v1033 = vsel %vm905, %v838, 0
        %v1036 = vsel %vm905, %v839, 0
        %v1039 = vsel %vm905, %v840, 0
        %v1042 = vsel %vm905, %v841, 0
        %v1045 = vsel %vm905, %v842, 0
        %v1048 = vsel %vm905, %v843, 0
        %v1051 = vsel %vm905, %v844, 0
        %v1054 = vsel %vm905, %v845, 0
        %v1057 = vsel %vm905, %v846, 0
        %v1060 = vsel %vm905, %v847, 0
        %v1063 = vsel %vm905, %v848, 0
        %v1066 = vsel %vm905, %v849, 0
        %v1069 = vsel %vm905, %v850, 0
        %v1072 = vsel %vm905, %v851, 0
        %v1075 = vsel %vm905, %v852, 0
        %v1078 = vsel %vm905, %v853, 0
        %v1081 = vsel %vm905, %v854, 0
        %v1084 = vsel %vm905, %v855, 0
        %v1087 = vsel %vm905, %v856, 0
        %v1090 = vsel %vm905, %v857, 0
        %v1093 = vsel %vm905, %v858, 0
        %v1096 = vsel %vm905, %v859, 0
        %v1099 = vsel %vm905, %v860, 0
        %v1102 = vsel %vm905, %v861, 0
        %v1105 = vsel %vm905, %v862, 0
        %v1108 = vsel %vm905, %v863, 0
        %v1111 = vsel %vm905, %v864, 0
        %v1114 = vsel %vm905, %v865, 0
        %v1117 = vsel %vm905, %v866, 0
        %v1120 = vsel %vm905, %v867, 0
        %v1123 = vsel %vm905, %v868, 0
        %v1126 = vsel %vm905, %v869, 0
        %v1129 = vsel %vm905, %v870, 0
        %v1132 = vsel %vm905, %v871, 0
        %v1135 = vsel %vm905, %v872, 0
        %v1138 = vsel %vm905, %v873, 0
        %v1141 = vsel %vm905, %v874, 0
        %v1144 = vsel %vm905, %v875, 0
        %v1147 = vsel %vm905, %v876, 0
        %v1150 = vsel %vm905, %v877, 0
        %v1153 = vsel %vm905, %v878, 0
        %v1156 = vsel %vm905, %v879, 0
        %v1159 = vsel %vm905, %v880, 0
        %v1162 = vsel %vm905, %v881, 0
        %v1165 = vsel %vm905, %v882, 0
        %v1168 = vsel %vm905, %v883, 0
        %v1171 = vsel %vm905, %v884, 0
        %v1174 = vsel %vm905, %v885, 0
        %v1177 = vsel %vm905, %v886, 0
        %v1180 = vsel %vm905, %v887, 0
        %v1183 = vsel %vm905, %v888, 0
        %v1186 = vsel %vm905, %v889, 0
        %v1189 = vsel %vm905, %v890, 0
        %v1192 = vsel %vm905, %v891, 0
        %v1195 = vsel %vm905, %v892, 0
        %v1198 = vsel %vm905, %v893, 0
        %vm1200 = vcmask 1044480
        %vm1201 = vcmask 1045504
        %v1202 = vsel %vm1200, 4294967295, 65535
        %v1203 = vsel %vm1201, %v1202, 0
        %v1205 = vand.u32 %v903, %v1203
        %1207 = vmatpush.bf16.msra.mxu0 0
        %1208 = vmatpush.bf16.msra.mxu0 0
        %1209 = vmatpush.bf16.msra.mxu0 0
        %1210 = vmatpush.bf16.msra.mxu0 0
        %1211 = vmatpush.bf16.msra.mxu0 0
        %1212 = vmatpush.bf16.msra.mxu0 0
        %1213 = vmatpush.bf16.msra.mxu0 %v1205
        %1214 = vmatpush.bf16.msra.mxu0 %v902
        %1215 = vmatmul.bf16.gmra.mxu0 %v907
        %v1216 = vpop.f32.mrf.mxu0
        %v1217 = vadd.f32 %v402, %v1216
        %v1218 = vpop.f32.mrf.mxu0
        %v1219 = vadd.f32 %v402, %v1218
        %1220 = vmatmul.bf16.gmra.mxu0 %v910
        %v1221 = vpop.f32.mrf.mxu0
        %v1222 = vadd.f32 %v402, %v1221
        %v1223 = vpop.f32.mrf.mxu0
        %v1224 = vadd.f32 %v402, %v1223
        %1225 = vmatmul.bf16.gmra.mxu0 %v913
        %v1226 = vpop.f32.mrf.mxu0
        %v1227 = vadd.f32 %v402, %v1226
        %v1228 = vpop.f32.mrf.mxu0
        %v1229 = vadd.f32 %v402, %v1228
        %1230 = vmatmul.bf16.gmra.mxu0 %v916
        %v1231 = vpop.f32.mrf.mxu0
        %v1232 = vadd.f32 %v402, %v1231
        %v1233 = vpop.f32.mrf.mxu0
        %v1234 = vadd.f32 %v402, %v1233
        %1235 = vmatmul.bf16.gmra.mxu0 %v919
        %v1236 = vpop.f32.mrf.mxu0
        %v1237 = vadd.f32 %v402, %v1236
        %v1238 = vpop.f32.mrf.mxu0
        %v1239 = vadd.f32 %v402, %v1238
        %1240 = vmatmul.bf16.gmra.mxu0 %v922
        %v1241 = vpop.f32.mrf.mxu0
        %v1242 = vadd.f32 %v402, %v1241
        %v1243 = vpop.f32.mrf.mxu0
        %v1244 = vadd.f32 %v402, %v1243
        %1245 = vmatmul.bf16.gmra.mxu0 %v925
        %v1246 = vpop.f32.mrf.mxu0
        %v1247 = vadd.f32 %v402, %v1246
        %v1248 = vpop.f32.mrf.mxu0
        %v1249 = vadd.f32 %v402, %v1248
        %1250 = vmatmul.bf16.gmra.mxu0 %v928
        %v1251 = vpop.f32.mrf.mxu0
        %v1252 = vadd.f32 %v402, %v1251
        %v1253 = vpop.f32.mrf.mxu0
        %v1254 = vadd.f32 %v402, %v1253
        %1255 = vmatmul.bf16.gmra.mxu0 %v931
        %v1256 = vpop.f32.mrf.mxu0
        %v1257 = vadd.f32 %v402, %v1256
        %v1258 = vpop.f32.mrf.mxu0
        %v1259 = vadd.f32 %v402, %v1258
        %1260 = vmatmul.bf16.gmra.mxu0 %v934
        %v1261 = vpop.f32.mrf.mxu0
        %v1262 = vadd.f32 %v402, %v1261
        %v1263 = vpop.f32.mrf.mxu0
        %v1264 = vadd.f32 %v402, %v1263
        %1265 = vmatmul.bf16.gmra.mxu0 %v937
        %v1266 = vpop.f32.mrf.mxu0
        %v1267 = vadd.f32 %v402, %v1266
        %v1268 = vpop.f32.mrf.mxu0
        %v1269 = vadd.f32 %v402, %v1268
        %1270 = vmatmul.bf16.gmra.mxu0 %v940
        %v1271 = vpop.f32.mrf.mxu0
        %v1272 = vadd.f32 %v402, %v1271
        %v1273 = vpop.f32.mrf.mxu0
        %v1274 = vadd.f32 %v402, %v1273
        %1275 = vmatmul.bf16.gmra.mxu0 %v943
        %v1276 = vpop.f32.mrf.mxu0
        %v1277 = vadd.f32 %v402, %v1276
        %v1278 = vpop.f32.mrf.mxu0
        %v1279 = vadd.f32 %v402, %v1278
        %1280 = vmatmul.bf16.gmra.mxu0 %v946
        %v1281 = vpop.f32.mrf.mxu0
        %v1282 = vadd.f32 %v402, %v1281
        %v1283 = vpop.f32.mrf.mxu0
        %v1284 = vadd.f32 %v402, %v1283
        %1285 = vmatmul.bf16.gmra.mxu0 %v949
        %v1286 = vpop.f32.mrf.mxu0
        %v1287 = vadd.f32 %v402, %v1286
        %v1288 = vpop.f32.mrf.mxu0
        %v1289 = vadd.f32 %v402, %v1288
        %1290 = vmatmul.bf16.gmra.mxu0 %v952
        %v1291 = vpop.f32.mrf.mxu0
        %v1292 = vadd.f32 %v402, %v1291
        %v1293 = vpop.f32.mrf.mxu0
        %v1294 = vadd.f32 %v402, %v1293
        %1295 = vmatmul.bf16.gmra.mxu0 %v955
        %v1296 = vpop.f32.mrf.mxu0
        %v1297 = vadd.f32 %v402, %v1296
        %v1298 = vpop.f32.mrf.mxu0
        %v1299 = vadd.f32 %v402, %v1298
        %1300 = vmatmul.bf16.gmra.mxu0 %v958
        %v1301 = vpop.f32.mrf.mxu0
        %v1302 = vadd.f32 %v402, %v1301
        %v1303 = vpop.f32.mrf.mxu0
        %v1304 = vadd.f32 %v402, %v1303
        %1305 = vmatmul.bf16.gmra.mxu0 %v961
        %v1306 = vpop.f32.mrf.mxu0
        %v1307 = vadd.f32 %v402, %v1306
        %v1308 = vpop.f32.mrf.mxu0
        %v1309 = vadd.f32 %v402, %v1308
        %1310 = vmatmul.bf16.gmra.mxu0 %v964
        %v1311 = vpop.f32.mrf.mxu0
        %v1312 = vadd.f32 %v402, %v1311
        %v1313 = vpop.f32.mrf.mxu0
        %v1314 = vadd.f32 %v402, %v1313
        %1315 = vmatmul.bf16.gmra.mxu0 %v967
        %v1316 = vpop.f32.mrf.mxu0
        %v1317 = vadd.f32 %v402, %v1316
        %v1318 = vpop.f32.mrf.mxu0
        %v1319 = vadd.f32 %v402, %v1318
        %1320 = vmatmul.bf16.gmra.mxu0 %v970
        %v1321 = vpop.f32.mrf.mxu0
        %v1322 = vadd.f32 %v402, %v1321
        %v1323 = vpop.f32.mrf.mxu0
        %v1324 = vadd.f32 %v402, %v1323
        %1325 = vmatmul.bf16.gmra.mxu0 %v973
        %v1326 = vpop.f32.mrf.mxu0
        %v1327 = vadd.f32 %v402, %v1326
        %v1328 = vpop.f32.mrf.mxu0
        %v1329 = vadd.f32 %v402, %v1328
        %1330 = vmatmul.bf16.gmra.mxu0 %v976
        %v1331 = vpop.f32.mrf.mxu0
        %v1332 = vadd.f32 %v402, %v1331
        %v1333 = vpop.f32.mrf.mxu0
        %v1334 = vadd.f32 %v402, %v1333
        %1335 = vmatmul.bf16.gmra.mxu0 %v979
        %v1336 = vpop.f32.mrf.mxu0
        %v1337 = vadd.f32 %v402, %v1336
        %v1338 = vpop.f32.mrf.mxu0
        %v1339 = vadd.f32 %v402, %v1338
        %1340 = vmatmul.bf16.gmra.mxu0 %v982
        %v1341 = vpop.f32.mrf.mxu0
        %v1342 = vadd.f32 %v402, %v1341
        %v1343 = vpop.f32.mrf.mxu0
        %v1344 = vadd.f32 %v402, %v1343
        %1345 = vmatmul.bf16.gmra.mxu0 %v985
        %v1346 = vpop.f32.mrf.mxu0
        %v1347 = vadd.f32 %v402, %v1346
        %v1348 = vpop.f32.mrf.mxu0
        %v1349 = vadd.f32 %v402, %v1348
        %1350 = vmatmul.bf16.gmra.mxu0 %v988
        %v1351 = vpop.f32.mrf.mxu0
        %v1352 = vadd.f32 %v402, %v1351
        %v1353 = vpop.f32.mrf.mxu0
        %v1354 = vadd.f32 %v402, %v1353
        %1355 = vmatmul.bf16.gmra.mxu0 %v991
        %v1356 = vpop.f32.mrf.mxu0
        %v1357 = vadd.f32 %v402, %v1356
        %v1358 = vpop.f32.mrf.mxu0
        %v1359 = vadd.f32 %v402, %v1358
        %1360 = vmatmul.bf16.gmra.mxu0 %v994
        %v1361 = vpop.f32.mrf.mxu0
        %v1362 = vadd.f32 %v402, %v1361
        %v1363 = vpop.f32.mrf.mxu0
        %v1364 = vadd.f32 %v402, %v1363
        %1365 = vmatmul.bf16.gmra.mxu0 %v997
        %v1366 = vpop.f32.mrf.mxu0
        %v1367 = vadd.f32 %v402, %v1366
        %v1368 = vpop.f32.mrf.mxu0
        %v1369 = vadd.f32 %v402, %v1368
        %1370 = vmatmul.bf16.gmra.mxu0 %v1000
        %v1371 = vpop.f32.mrf.mxu0
        %v1372 = vadd.f32 %v402, %v1371
        %v1373 = vpop.f32.mrf.mxu0
        %v1374 = vadd.f32 %v402, %v1373
        %1375 = vmatmul.bf16.gmra.mxu0 %v1003
        %v1376 = vpop.f32.mrf.mxu0
        %v1377 = vadd.f32 %v402, %v1376
        %v1378 = vpop.f32.mrf.mxu0
        %v1379 = vadd.f32 %v402, %v1378
        %1380 = vmatmul.bf16.gmra.mxu0 %v1006
        %v1381 = vpop.f32.mrf.mxu0
        %v1382 = vadd.f32 %v402, %v1381
        %v1383 = vpop.f32.mrf.mxu0
        %v1384 = vadd.f32 %v402, %v1383
        %1385 = vmatmul.bf16.gmra.mxu0 %v1009
        %v1386 = vpop.f32.mrf.mxu0
        %v1387 = vadd.f32 %v402, %v1386
        %v1388 = vpop.f32.mrf.mxu0
        %v1389 = vadd.f32 %v402, %v1388
        %1390 = vmatmul.bf16.gmra.mxu0 %v1012
        %v1391 = vpop.f32.mrf.mxu0
        %v1392 = vadd.f32 %v402, %v1391
        %v1393 = vpop.f32.mrf.mxu0
        %v1394 = vadd.f32 %v402, %v1393
        %1395 = vmatmul.bf16.gmra.mxu0 %v1015
        %v1396 = vpop.f32.mrf.mxu0
        %v1397 = vadd.f32 %v402, %v1396
        %v1398 = vpop.f32.mrf.mxu0
        %v1399 = vadd.f32 %v402, %v1398
        %1400 = vmatmul.bf16.gmra.mxu0 %v1018
        %v1401 = vpop.f32.mrf.mxu0
        %v1402 = vadd.f32 %v402, %v1401
        %v1403 = vpop.f32.mrf.mxu0
        %v1404 = vadd.f32 %v402, %v1403
        %1405 = vmatmul.bf16.gmra.mxu0 %v1021
        %v1406 = vpop.f32.mrf.mxu0
        %v1407 = vadd.f32 %v402, %v1406
        %v1408 = vpop.f32.mrf.mxu0
        %v1409 = vadd.f32 %v402, %v1408
        %1410 = vmatmul.bf16.gmra.mxu0 %v1024
        %v1411 = vpop.f32.mrf.mxu0
        %v1412 = vadd.f32 %v402, %v1411
        %v1413 = vpop.f32.mrf.mxu0
        %v1414 = vadd.f32 %v402, %v1413
        %1415 = vmatmul.bf16.gmra.mxu0 %v1027
        %v1416 = vpop.f32.mrf.mxu0
        %v1417 = vadd.f32 %v402, %v1416
        %v1418 = vpop.f32.mrf.mxu0
        %v1419 = vadd.f32 %v402, %v1418
        %1420 = vmatmul.bf16.gmra.mxu0 %v1030
        %v1421 = vpop.f32.mrf.mxu0
        %v1422 = vadd.f32 %v402, %v1421
        %v1423 = vpop.f32.mrf.mxu0
        %v1424 = vadd.f32 %v402, %v1423
        %1425 = vmatmul.bf16.gmra.mxu0 %v1033
        %v1426 = vpop.f32.mrf.mxu0
        %v1427 = vadd.f32 %v402, %v1426
        %v1428 = vpop.f32.mrf.mxu0
        %v1429 = vadd.f32 %v402, %v1428
        %1430 = vmatmul.bf16.gmra.mxu0 %v1036
        %v1431 = vpop.f32.mrf.mxu0
        %v1432 = vadd.f32 %v402, %v1431
        %v1433 = vpop.f32.mrf.mxu0
        %v1434 = vadd.f32 %v402, %v1433
        %1435 = vmatmul.bf16.gmra.mxu0 %v1039
        %v1436 = vpop.f32.mrf.mxu0
        %v1437 = vadd.f32 %v402, %v1436
        %v1438 = vpop.f32.mrf.mxu0
        %v1439 = vadd.f32 %v402, %v1438
        %1440 = vmatmul.bf16.gmra.mxu0 %v1042
        %v1441 = vpop.f32.mrf.mxu0
        %v1442 = vadd.f32 %v402, %v1441
        %v1443 = vpop.f32.mrf.mxu0
        %v1444 = vadd.f32 %v402, %v1443
        %1445 = vmatmul.bf16.gmra.mxu0 %v1045
        %v1446 = vpop.f32.mrf.mxu0
        %v1447 = vadd.f32 %v402, %v1446
        %v1448 = vpop.f32.mrf.mxu0
        %v1449 = vadd.f32 %v402, %v1448
        %1450 = vmatmul.bf16.gmra.mxu0 %v1048
        %v1451 = vpop.f32.mrf.mxu0
        %v1452 = vadd.f32 %v402, %v1451
        %v1453 = vpop.f32.mrf.mxu0
        %v1454 = vadd.f32 %v402, %v1453
        %1455 = vmatmul.bf16.gmra.mxu0 %v1051
        %v1456 = vpop.f32.mrf.mxu0
        %v1457 = vadd.f32 %v402, %v1456
        %v1458 = vpop.f32.mrf.mxu0
        %v1459 = vadd.f32 %v402, %v1458
        %1460 = vmatmul.bf16.gmra.mxu0 %v1054
        %v1461 = vpop.f32.mrf.mxu0
        %v1462 = vadd.f32 %v402, %v1461
        %v1463 = vpop.f32.mrf.mxu0
        %v1464 = vadd.f32 %v402, %v1463
        %1465 = vmatmul.bf16.gmra.mxu0 %v1057
        %v1466 = vpop.f32.mrf.mxu0
        %v1467 = vadd.f32 %v402, %v1466
        %v1468 = vpop.f32.mrf.mxu0
        %v1469 = vadd.f32 %v402, %v1468
        %1470 = vmatmul.bf16.gmra.mxu0 %v1060
        %v1471 = vpop.f32.mrf.mxu0
        %v1472 = vadd.f32 %v402, %v1471
        %v1473 = vpop.f32.mrf.mxu0
        %v1474 = vadd.f32 %v402, %v1473
        %1475 = vmatmul.bf16.gmra.mxu0 %v1063
        %v1476 = vpop.f32.mrf.mxu0
        %v1477 = vadd.f32 %v402, %v1476
        %v1478 = vpop.f32.mrf.mxu0
        %v1479 = vadd.f32 %v402, %v1478
        %1480 = vmatmul.bf16.gmra.mxu0 %v1066
        %v1481 = vpop.f32.mrf.mxu0
        %v1482 = vadd.f32 %v402, %v1481
        %v1483 = vpop.f32.mrf.mxu0
        %v1484 = vadd.f32 %v402, %v1483
        %1485 = vmatmul.bf16.gmra.mxu0 %v1069
        %v1486 = vpop.f32.mrf.mxu0
        %v1487 = vadd.f32 %v402, %v1486
        %v1488 = vpop.f32.mrf.mxu0
        %v1489 = vadd.f32 %v402, %v1488
        %1490 = vmatmul.bf16.gmra.mxu0 %v1072
        %v1491 = vpop.f32.mrf.mxu0
        %v1492 = vadd.f32 %v402, %v1491
        %v1493 = vpop.f32.mrf.mxu0
        %v1494 = vadd.f32 %v402, %v1493
        %1495 = vmatmul.bf16.gmra.mxu0 %v1075
        %v1496 = vpop.f32.mrf.mxu0
        %v1497 = vadd.f32 %v402, %v1496
        %v1498 = vpop.f32.mrf.mxu0
        %v1499 = vadd.f32 %v402, %v1498
        %1500 = vmatmul.bf16.gmra.mxu0 %v1078
        %v1501 = vpop.f32.mrf.mxu0
        %v1502 = vadd.f32 %v402, %v1501
        %v1503 = vpop.f32.mrf.mxu0
        %v1504 = vadd.f32 %v402, %v1503
        %1505 = vmatmul.bf16.gmra.mxu0 %v1081
        %v1506 = vpop.f32.mrf.mxu0
        %v1507 = vadd.f32 %v402, %v1506
        %v1508 = vpop.f32.mrf.mxu0
        %v1509 = vadd.f32 %v402, %v1508
        %1510 = vmatmul.bf16.gmra.mxu0 %v1084
        %v1511 = vpop.f32.mrf.mxu0
        %v1512 = vadd.f32 %v402, %v1511
        %v1513 = vpop.f32.mrf.mxu0
        %v1514 = vadd.f32 %v402, %v1513
        %1515 = vmatmul.bf16.gmra.mxu0 %v1087
        %v1516 = vpop.f32.mrf.mxu0
        %v1517 = vadd.f32 %v402, %v1516
        %v1518 = vpop.f32.mrf.mxu0
        %v1519 = vadd.f32 %v402, %v1518
        %1520 = vmatmul.bf16.gmra.mxu0 %v1090
        %v1521 = vpop.f32.mrf.mxu0
        %v1522 = vadd.f32 %v402, %v1521
        %v1523 = vpop.f32.mrf.mxu0
        %v1524 = vadd.f32 %v402, %v1523
        %1525 = vmatmul.bf16.gmra.mxu0 %v1093
        %v1526 = vpop.f32.mrf.mxu0
        %v1527 = vadd.f32 %v402, %v1526
        %v1528 = vpop.f32.mrf.mxu0
        %v1529 = vadd.f32 %v402, %v1528
        %1530 = vmatmul.bf16.gmra.mxu0 %v1096
        %v1531 = vpop.f32.mrf.mxu0
        %v1532 = vadd.f32 %v402, %v1531
        %v1533 = vpop.f32.mrf.mxu0
        %v1534 = vadd.f32 %v402, %v1533
        %1535 = vmatmul.bf16.gmra.mxu0 %v1099
        %v1536 = vpop.f32.mrf.mxu0
        %v1537 = vadd.f32 %v402, %v1536
        %v1538 = vpop.f32.mrf.mxu0
        %v1539 = vadd.f32 %v402, %v1538
        %1540 = vmatmul.bf16.gmra.mxu0 %v1102
        %v1541 = vpop.f32.mrf.mxu0
        %v1542 = vadd.f32 %v402, %v1541
        %v1543 = vpop.f32.mrf.mxu0
        %v1544 = vadd.f32 %v402, %v1543
        %1545 = vmatmul.bf16.gmra.mxu0 %v1105
        %v1546 = vpop.f32.mrf.mxu0
        %v1547 = vadd.f32 %v402, %v1546
        %v1548 = vpop.f32.mrf.mxu0
        %v1549 = vadd.f32 %v402, %v1548
        %1550 = vmatmul.bf16.gmra.mxu0 %v1108
        %v1551 = vpop.f32.mrf.mxu0
        %v1552 = vadd.f32 %v402, %v1551
        %v1553 = vpop.f32.mrf.mxu0
        %v1554 = vadd.f32 %v402, %v1553
        %1555 = vmatmul.bf16.gmra.mxu0 %v1111
        %v1556 = vpop.f32.mrf.mxu0
        %v1557 = vadd.f32 %v402, %v1556
        %v1558 = vpop.f32.mrf.mxu0
        %v1559 = vadd.f32 %v402, %v1558
        %1560 = vmatmul.bf16.gmra.mxu0 %v1114
        %v1561 = vpop.f32.mrf.mxu0
        %v1562 = vadd.f32 %v402, %v1561
        %v1563 = vpop.f32.mrf.mxu0
        %v1564 = vadd.f32 %v402, %v1563
        %1565 = vmatmul.bf16.gmra.mxu0 %v1117
        %v1566 = vpop.f32.mrf.mxu0
        %v1567 = vadd.f32 %v402, %v1566
        %v1568 = vpop.f32.mrf.mxu0
        %v1569 = vadd.f32 %v402, %v1568
        %1570 = vmatmul.bf16.gmra.mxu0 %v1120
        %v1571 = vpop.f32.mrf.mxu0
        %v1572 = vadd.f32 %v402, %v1571
        %v1573 = vpop.f32.mrf.mxu0
        %v1574 = vadd.f32 %v402, %v1573
        %1575 = vmatmul.bf16.gmra.mxu0 %v1123
        %v1576 = vpop.f32.mrf.mxu0
        %v1577 = vadd.f32 %v402, %v1576
        %v1578 = vpop.f32.mrf.mxu0
        %v1579 = vadd.f32 %v402, %v1578
        %1580 = vmatmul.bf16.gmra.mxu0 %v1126
        %v1581 = vpop.f32.mrf.mxu0
        %v1582 = vadd.f32 %v402, %v1581
        %v1583 = vpop.f32.mrf.mxu0
        %v1584 = vadd.f32 %v402, %v1583
        %1585 = vmatmul.bf16.gmra.mxu0 %v1129
        %v1586 = vpop.f32.mrf.mxu0
        %v1587 = vadd.f32 %v402, %v1586
        %v1588 = vpop.f32.mrf.mxu0
        %v1589 = vadd.f32 %v402, %v1588
        %1590 = vmatmul.bf16.gmra.mxu0 %v1132
        %v1591 = vpop.f32.mrf.mxu0
        %v1592 = vadd.f32 %v402, %v1591
        %v1593 = vpop.f32.mrf.mxu0
        %v1594 = vadd.f32 %v402, %v1593
        %1595 = vmatmul.bf16.gmra.mxu0 %v1135
        %v1596 = vpop.f32.mrf.mxu0
        %v1597 = vadd.f32 %v402, %v1596
        %v1598 = vpop.f32.mrf.mxu0
        %v1599 = vadd.f32 %v402, %v1598
        %1600 = vmatmul.bf16.gmra.mxu0 %v1138
        %v1601 = vpop.f32.mrf.mxu0
        %v1602 = vadd.f32 %v402, %v1601
        %v1603 = vpop.f32.mrf.mxu0
        %v1604 = vadd.f32 %v402, %v1603
        %1605 = vmatmul.bf16.gmra.mxu0 %v1141
        %v1606 = vpop.f32.mrf.mxu0
        %v1607 = vadd.f32 %v402, %v1606
        %v1608 = vpop.f32.mrf.mxu0
        %v1609 = vadd.f32 %v402, %v1608
        %1610 = vmatmul.bf16.gmra.mxu0 %v1144
        %v1611 = vpop.f32.mrf.mxu0
        %v1612 = vadd.f32 %v402, %v1611
        %v1613 = vpop.f32.mrf.mxu0
        %v1614 = vadd.f32 %v402, %v1613
        %1615 = vmatmul.bf16.gmra.mxu0 %v1147
        %v1616 = vpop.f32.mrf.mxu0
        %v1617 = vadd.f32 %v402, %v1616
        %v1618 = vpop.f32.mrf.mxu0
        %v1619 = vadd.f32 %v402, %v1618
        %1620 = vmatmul.bf16.gmra.mxu0 %v1150
        %v1621 = vpop.f32.mrf.mxu0
        %v1622 = vadd.f32 %v402, %v1621
        %v1623 = vpop.f32.mrf.mxu0
        %v1624 = vadd.f32 %v402, %v1623
        %1625 = vmatmul.bf16.gmra.mxu0 %v1153
        %v1626 = vpop.f32.mrf.mxu0
        %v1627 = vadd.f32 %v402, %v1626
        %v1628 = vpop.f32.mrf.mxu0
        %v1629 = vadd.f32 %v402, %v1628
        %1630 = vmatmul.bf16.gmra.mxu0 %v1156
        %v1631 = vpop.f32.mrf.mxu0
        %v1632 = vadd.f32 %v402, %v1631
        %v1633 = vpop.f32.mrf.mxu0
        %v1634 = vadd.f32 %v402, %v1633
        %1635 = vmatmul.bf16.gmra.mxu0 %v1159
        %v1636 = vpop.f32.mrf.mxu0
        %v1637 = vadd.f32 %v402, %v1636
        %v1638 = vpop.f32.mrf.mxu0
        %v1639 = vadd.f32 %v402, %v1638
        %1640 = vmatmul.bf16.gmra.mxu0 %v1162
        %v1641 = vpop.f32.mrf.mxu0
        %v1642 = vadd.f32 %v402, %v1641
        %v1643 = vpop.f32.mrf.mxu0
        %v1644 = vadd.f32 %v402, %v1643
        %1645 = vmatmul.bf16.gmra.mxu0 %v1165
        %v1646 = vpop.f32.mrf.mxu0
        %v1647 = vadd.f32 %v402, %v1646
        %v1648 = vpop.f32.mrf.mxu0
        %v1649 = vadd.f32 %v402, %v1648
        %1650 = vmatmul.bf16.gmra.mxu0 %v1168
        %v1651 = vpop.f32.mrf.mxu0
        %v1652 = vadd.f32 %v402, %v1651
        %v1653 = vpop.f32.mrf.mxu0
        %v1654 = vadd.f32 %v402, %v1653
        %1655 = vmatmul.bf16.gmra.mxu0 %v1171
        %v1656 = vpop.f32.mrf.mxu0
        %v1657 = vadd.f32 %v402, %v1656
        %v1658 = vpop.f32.mrf.mxu0
        %v1659 = vadd.f32 %v402, %v1658
        %1660 = vmatmul.bf16.gmra.mxu0 %v1174
        %v1661 = vpop.f32.mrf.mxu0
        %v1662 = vadd.f32 %v402, %v1661
        %v1663 = vpop.f32.mrf.mxu0
        %v1664 = vadd.f32 %v402, %v1663
        %1665 = vmatmul.bf16.gmra.mxu0 %v1177
        %v1666 = vpop.f32.mrf.mxu0
        %v1667 = vadd.f32 %v402, %v1666
        %v1668 = vpop.f32.mrf.mxu0
        %v1669 = vadd.f32 %v402, %v1668
        %1670 = vmatmul.bf16.gmra.mxu0 %v1180
        %v1671 = vpop.f32.mrf.mxu0
        %v1672 = vadd.f32 %v402, %v1671
        %v1673 = vpop.f32.mrf.mxu0
        %v1674 = vadd.f32 %v402, %v1673
        %1675 = vmatmul.bf16.gmra.mxu0 %v1183
        %v1676 = vpop.f32.mrf.mxu0
        %v1677 = vadd.f32 %v402, %v1676
        %v1678 = vpop.f32.mrf.mxu0
        %v1679 = vadd.f32 %v402, %v1678
        %1680 = vmatmul.bf16.gmra.mxu0 %v1186
        %v1681 = vpop.f32.mrf.mxu0
        %v1682 = vadd.f32 %v402, %v1681
        %v1683 = vpop.f32.mrf.mxu0
        %v1684 = vadd.f32 %v402, %v1683
        %1685 = vmatmul.bf16.gmra.mxu0 %v1189
        %v1686 = vpop.f32.mrf.mxu0
        %v1687 = vadd.f32 %v402, %v1686
        %v1688 = vpop.f32.mrf.mxu0
        %v1689 = vadd.f32 %v402, %v1688
        %1690 = vmatmul.bf16.gmra.mxu0 %v1192
        %v1691 = vpop.f32.mrf.mxu0
        %v1692 = vadd.f32 %v402, %v1691
        %v1693 = vpop.f32.mrf.mxu0
        %v1694 = vadd.f32 %v402, %v1693
        %1695 = vmatmul.bf16.gmra.mxu0 %v1195
        %v1696 = vpop.f32.mrf.mxu0
        %v1697 = vadd.f32 %v402, %v1696
        %v1698 = vpop.f32.mrf.mxu0
        %v1699 = vadd.f32 %v402, %v1698
        %1700 = vmatmul.bf16.gmra.mxu0 %v1198
        %v1701 = vpop.f32.mrf.mxu0
        %v1702 = vadd.f32 %v402, %v1701
        %v1703 = vpop.f32.mrf.mxu0
        %v1704 = vadd.f32 %v402, %v1703
        %1705 = vdwg.mxu0
        %vm1706 = vcmp.ge.f32.partialorder %v1217, 0.0
        %vm1707 = vcmp.ge.f32.partialorder %v1219, 0.0
        %vm1708 = vcmp.ge.f32.partialorder %v1222, 0.0
        %vm1709 = vcmp.ge.f32.partialorder %v1224, 0.0
        %vm1710 = vcmp.ge.f32.partialorder %v1227, 0.0
        %vm1711 = vcmp.ge.f32.partialorder %v1229, 0.0
        %vm1712 = vcmp.ge.f32.partialorder %v1232, 0.0
        %vm1713 = vcmp.ge.f32.partialorder %v1234, 0.0
        %vm1714 = vcmp.ge.f32.partialorder %v1237, 0.0
        %vm1715 = vcmp.ge.f32.partialorder %v1239, 0.0
        %vm1716 = vcmp.ge.f32.partialorder %v1242, 0.0
        %vm1717 = vcmp.ge.f32.partialorder %v1244, 0.0
        %vm1718 = vcmp.ge.f32.partialorder %v1247, 0.0
        %vm1719 = vcmp.ge.f32.partialorder %v1249, 0.0
        %vm1720 = vcmp.ge.f32.partialorder %v1252, 0.0
        %vm1721 = vcmp.ge.f32.partialorder %v1254, 0.0
        %vm1722 = vcmp.ge.f32.partialorder %v1257, 0.0
        %vm1723 = vcmp.ge.f32.partialorder %v1259, 0.0
        %vm1724 = vcmp.ge.f32.partialorder %v1262, 0.0
        %vm1725 = vcmp.ge.f32.partialorder %v1264, 0.0
        %vm1726 = vcmp.ge.f32.partialorder %v1267, 0.0
        %vm1727 = vcmp.ge.f32.partialorder %v1269, 0.0
        %vm1728 = vcmp.ge.f32.partialorder %v1272, 0.0
        %vm1729 = vcmp.ge.f32.partialorder %v1274, 0.0
        %vm1730 = vcmp.ge.f32.partialorder %v1277, 0.0
        %vm1731 = vcmp.ge.f32.partialorder %v1279, 0.0
        %vm1732 = vcmp.ge.f32.partialorder %v1282, 0.0
        %vm1733 = vcmp.ge.f32.partialorder %v1284, 0.0
        %vm1734 = vcmp.ge.f32.partialorder %v1287, 0.0
        %vm1735 = vcmp.ge.f32.partialorder %v1289, 0.0
        %vm1736 = vcmp.ge.f32.partialorder %v1292, 0.0
        %vm1737 = vcmp.ge.f32.partialorder %v1294, 0.0
        %vm1738 = vcmp.ge.f32.partialorder %v1297, 0.0
        %vm1739 = vcmp.ge.f32.partialorder %v1299, 0.0
        %vm1740 = vcmp.ge.f32.partialorder %v1302, 0.0
        %vm1741 = vcmp.ge.f32.partialorder %v1304, 0.0
        %vm1742 = vcmp.ge.f32.partialorder %v1307, 0.0
        %vm1743 = vcmp.ge.f32.partialorder %v1309, 0.0
        %vm1744 = vcmp.ge.f32.partialorder %v1312, 0.0
        %vm1745 = vcmp.ge.f32.partialorder %v1314, 0.0
        %vm1746 = vcmp.ge.f32.partialorder %v1317, 0.0
        %vm1747 = vcmp.ge.f32.partialorder %v1319, 0.0
        %vm1748 = vcmp.ge.f32.partialorder %v1322, 0.0
        %vm1749 = vcmp.ge.f32.partialorder %v1324, 0.0
        %vm1750 = vcmp.ge.f32.partialorder %v1327, 0.0
        %vm1751 = vcmp.ge.f32.partialorder %v1329, 0.0
        %vm1752 = vcmp.ge.f32.partialorder %v1332, 0.0
        %vm1753 = vcmp.ge.f32.partialorder %v1334, 0.0
        %vm1754 = vcmp.ge.f32.partialorder %v1337, 0.0
        %vm1755 = vcmp.ge.f32.partialorder %v1339, 0.0
        %vm1756 = vcmp.ge.f32.partialorder %v1342, 0.0
        %vm1757 = vcmp.ge.f32.partialorder %v1344, 0.0
        %vm1758 = vcmp.ge.f32.partialorder %v1347, 0.0
        %vm1759 = vcmp.ge.f32.partialorder %v1349, 0.0
        %vm1760 = vcmp.ge.f32.partialorder %v1352, 0.0
        %vm1761 = vcmp.ge.f32.partialorder %v1354, 0.0
        %vm1762 = vcmp.ge.f32.partialorder %v1357, 0.0
        %vm1763 = vcmp.ge.f32.partialorder %v1359, 0.0
        %vm1764 = vcmp.ge.f32.partialorder %v1362, 0.0
        %vm1765 = vcmp.ge.f32.partialorder %v1364, 0.0
        %vm1766 = vcmp.ge.f32.partialorder %v1367, 0.0
        %vm1767 = vcmp.ge.f32.partialorder %v1369, 0.0
        %vm1768 = vcmp.ge.f32.partialorder %v1372, 0.0
        %vm1769 = vcmp.ge.f32.partialorder %v1374, 0.0
        %vm1770 = vcmp.ge.f32.partialorder %v1377, 0.0
        %vm1771 = vcmp.ge.f32.partialorder %v1379, 0.0
        %vm1772 = vcmp.ge.f32.partialorder %v1382, 0.0
        %vm1773 = vcmp.ge.f32.partialorder %v1384, 0.0
        %vm1774 = vcmp.ge.f32.partialorder %v1387, 0.0
        %vm1775 = vcmp.ge.f32.partialorder %v1389, 0.0
        %vm1776 = vcmp.ge.f32.partialorder %v1392, 0.0
        %vm1777 = vcmp.ge.f32.partialorder %v1394, 0.0
        %vm1778 = vcmp.ge.f32.partialorder %v1397, 0.0
        %vm1779 = vcmp.ge.f32.partialorder %v1399, 0.0
        %vm1780 = vcmp.ge.f32.partialorder %v1402, 0.0
        %vm1781 = vcmp.ge.f32.partialorder %v1404, 0.0
        %vm1782 = vcmp.ge.f32.partialorder %v1407, 0.0
        %vm1783 = vcmp.ge.f32.partialorder %v1409, 0.0
        %vm1784 = vcmp.ge.f32.partialorder %v1412, 0.0
        %vm1785 = vcmp.ge.f32.partialorder %v1414, 0.0
        %vm1786 = vcmp.ge.f32.partialorder %v1417, 0.0
        %vm1787 = vcmp.ge.f32.partialorder %v1419, 0.0
        %vm1788 = vcmp.ge.f32.partialorder %v1422, 0.0
        %vm1789 = vcmp.ge.f32.partialorder %v1424, 0.0
        %vm1790 = vcmp.ge.f32.partialorder %v1427, 0.0
        %vm1791 = vcmp.ge.f32.partialorder %v1429, 0.0
        %vm1792 = vcmp.ge.f32.partialorder %v1432, 0.0
        %vm1793 = vcmp.ge.f32.partialorder %v1434, 0.0
        %vm1794 = vcmp.ge.f32.partialorder %v1437, 0.0
        %vm1795 = vcmp.ge.f32.partialorder %v1439, 0.0
        %vm1796 = vcmp.ge.f32.partialorder %v1442, 0.0
        %vm1797 = vcmp.ge.f32.partialorder %v1444, 0.0
        %vm1798 = vcmp.ge.f32.partialorder %v1447, 0.0
        %vm1799 = vcmp.ge.f32.partialorder %v1449, 0.0
        %vm1800 = vcmp.ge.f32.partialorder %v1452, 0.0
        %vm1801 = vcmp.ge.f32.partialorder %v1454, 0.0
        %vm1802 = vcmp.ge.f32.partialorder %v1457, 0.0
        %vm1803 = vcmp.ge.f32.partialorder %v1459, 0.0
        %vm1804 = vcmp.ge.f32.partialorder %v1462, 0.0
        %vm1805 = vcmp.ge.f32.partialorder %v1464, 0.0
        %vm1806 = vcmp.ge.f32.partialorder %v1467, 0.0
        %vm1807 = vcmp.ge.f32.partialorder %v1469, 0.0
        %vm1808 = vcmp.ge.f32.partialorder %v1472, 0.0
        %vm1809 = vcmp.ge.f32.partialorder %v1474, 0.0
        %vm1810 = vcmp.ge.f32.partialorder %v1477, 0.0
        %vm1811 = vcmp.ge.f32.partialorder %v1479, 0.0
        %vm1812 = vcmp.ge.f32.partialorder %v1482, 0.0
        %vm1813 = vcmp.ge.f32.partialorder %v1484, 0.0
        %vm1814 = vcmp.ge.f32.partialorder %v1487, 0.0
        %vm1815 = vcmp.ge.f32.partialorder %v1489, 0.0
        %vm1816 = vcmp.ge.f32.partialorder %v1492, 0.0
        %vm1817 = vcmp.ge.f32.partialorder %v1494, 0.0
        %vm1818 = vcmp.ge.f32.partialorder %v1497, 0.0
        %vm1819 = vcmp.ge.f32.partialorder %v1499, 0.0
        %vm1820 = vcmp.ge.f32.partialorder %v1502, 0.0
        %vm1821 = vcmp.ge.f32.partialorder %v1504, 0.0
        %vm1822 = vcmp.ge.f32.partialorder %v1507, 0.0
        %vm1823 = vcmp.ge.f32.partialorder %v1509, 0.0
        %vm1824 = vcmp.ge.f32.partialorder %v1512, 0.0
        %vm1825 = vcmp.ge.f32.partialorder %v1514, 0.0
        %vm1826 = vcmp.ge.f32.partialorder %v1517, 0.0
        %vm1827 = vcmp.ge.f32.partialorder %v1519, 0.0
        %vm1828 = vcmp.ge.f32.partialorder %v1522, 0.0
        %vm1829 = vcmp.ge.f32.partialorder %v1524, 0.0
        %vm1830 = vcmp.ge.f32.partialorder %v1527, 0.0
        %vm1831 = vcmp.ge.f32.partialorder %v1529, 0.0
        %vm1832 = vcmp.ge.f32.partialorder %v1532, 0.0
        %vm1833 = vcmp.ge.f32.partialorder %v1534, 0.0
        %vm1834 = vcmp.ge.f32.partialorder %v1537, 0.0
        %vm1835 = vcmp.ge.f32.partialorder %v1539, 0.0
        %vm1836 = vcmp.ge.f32.partialorder %v1542, 0.0
        %vm1837 = vcmp.ge.f32.partialorder %v1544, 0.0
        %vm1838 = vcmp.ge.f32.partialorder %v1547, 0.0
        %vm1839 = vcmp.ge.f32.partialorder %v1549, 0.0
        %vm1840 = vcmp.ge.f32.partialorder %v1552, 0.0
        %vm1841 = vcmp.ge.f32.partialorder %v1554, 0.0
        %vm1842 = vcmp.ge.f32.partialorder %v1557, 0.0
        %vm1843 = vcmp.ge.f32.partialorder %v1559, 0.0
        %vm1844 = vcmp.ge.f32.partialorder %v1562, 0.0
        %vm1845 = vcmp.ge.f32.partialorder %v1564, 0.0
        %vm1846 = vcmp.ge.f32.partialorder %v1567, 0.0
        %vm1847 = vcmp.ge.f32.partialorder %v1569, 0.0
        %vm1848 = vcmp.ge.f32.partialorder %v1572, 0.0
        %vm1849 = vcmp.ge.f32.partialorder %v1574, 0.0
        %vm1850 = vcmp.ge.f32.partialorder %v1577, 0.0
        %vm1851 = vcmp.ge.f32.partialorder %v1579, 0.0
        %vm1852 = vcmp.ge.f32.partialorder %v1582, 0.0
        %vm1853 = vcmp.ge.f32.partialorder %v1584, 0.0
        %vm1854 = vcmp.ge.f32.partialorder %v1587, 0.0
        %vm1855 = vcmp.ge.f32.partialorder %v1589, 0.0
        %vm1856 = vcmp.ge.f32.partialorder %v1592, 0.0
        %vm1857 = vcmp.ge.f32.partialorder %v1594, 0.0
        %vm1858 = vcmp.ge.f32.partialorder %v1597, 0.0
        %vm1859 = vcmp.ge.f32.partialorder %v1599, 0.0
        %vm1860 = vcmp.ge.f32.partialorder %v1602, 0.0
        %vm1861 = vcmp.ge.f32.partialorder %v1604, 0.0
        %vm1862 = vcmp.ge.f32.partialorder %v1607, 0.0
        %vm1863 = vcmp.ge.f32.partialorder %v1609, 0.0
        %vm1864 = vcmp.ge.f32.partialorder %v1612, 0.0
        %vm1865 = vcmp.ge.f32.partialorder %v1614, 0.0
        %vm1866 = vcmp.ge.f32.partialorder %v1617, 0.0
        %vm1867 = vcmp.ge.f32.partialorder %v1619, 0.0
        %vm1868 = vcmp.ge.f32.partialorder %v1622, 0.0
        %vm1869 = vcmp.ge.f32.partialorder %v1624, 0.0
        %vm1870 = vcmp.ge.f32.partialorder %v1627, 0.0
        %vm1871 = vcmp.ge.f32.partialorder %v1629, 0.0
        %vm1872 = vcmp.ge.f32.partialorder %v1632, 0.0
        %vm1873 = vcmp.ge.f32.partialorder %v1634, 0.0
        %vm1874 = vcmp.ge.f32.partialorder %v1637, 0.0
        %vm1875 = vcmp.ge.f32.partialorder %v1639, 0.0
        %vm1876 = vcmp.ge.f32.partialorder %v1642, 0.0
        %vm1877 = vcmp.ge.f32.partialorder %v1644, 0.0
        %vm1878 = vcmp.ge.f32.partialorder %v1647, 0.0
        %vm1879 = vcmp.ge.f32.partialorder %v1649, 0.0
        %vm1880 = vcmp.ge.f32.partialorder %v1652, 0.0
        %vm1881 = vcmp.ge.f32.partialorder %v1654, 0.0
        %vm1882 = vcmp.ge.f32.partialorder %v1657, 0.0
        %vm1883 = vcmp.ge.f32.partialorder %v1659, 0.0
        %vm1884 = vcmp.ge.f32.partialorder %v1662, 0.0
        %vm1885 = vcmp.ge.f32.partialorder %v1664, 0.0
        %vm1886 = vcmp.ge.f32.partialorder %v1667, 0.0
        %vm1887 = vcmp.ge.f32.partialorder %v1669, 0.0
        %vm1888 = vcmp.ge.f32.partialorder %v1672, 0.0
        %vm1889 = vcmp.ge.f32.partialorder %v1674, 0.0
        %vm1890 = vcmp.ge.f32.partialorder %v1677, 0.0
        %vm1891 = vcmp.ge.f32.partialorder %v1679, 0.0
        %vm1892 = vcmp.ge.f32.partialorder %v1682, 0.0
        %vm1893 = vcmp.ge.f32.partialorder %v1684, 0.0
        %vm1894 = vcmp.ge.f32.partialorder %v1687, 0.0
        %vm1895 = vcmp.ge.f32.partialorder %v1689, 0.0
        %vm1896 = vcmp.ge.f32.partialorder %v1692, 0.0
        %vm1897 = vcmp.ge.f32.partialorder %v1694, 0.0
        %vm1898 = vcmp.ge.f32.partialorder %v1697, 0.0
        %vm1899 = vcmp.ge.f32.partialorder %v1699, 0.0
        %vm1900 = vcmp.ge.f32.partialorder %v1702, 0.0
        %vm1901 = vcmp.ge.f32.partialorder %v1704, 0.0
        %v1902 = vld [vmem:[%s3] sm:$0x1]
        %v1904 = vperm.slane %v1902, 0
        %v1906 = vmul.f32 %v1217, %v1904
        %v1907 = vmul.f32 %v1219, %v1904
        %v1908 = vmul.f32 %v1222, %v1904
        %v1909 = vmul.f32 %v1224, %v1904
        %v1910 = vmul.f32 %v1227, %v1904
        %v1911 = vmul.f32 %v1229, %v1904
        %v1912 = vmul.f32 %v1232, %v1904
        %v1913 = vmul.f32 %v1234, %v1904
        %v1914 = vmul.f32 %v1237, %v1904
        %v1915 = vmul.f32 %v1239, %v1904
        %v1916 = vmul.f32 %v1242, %v1904
        %v1917 = vmul.f32 %v1244, %v1904
        %v1918 = vmul.f32 %v1247, %v1904
        %v1919 = vmul.f32 %v1249, %v1904
        %v1920 = vmul.f32 %v1252, %v1904
        %v1921 = vmul.f32 %v1254, %v1904
        %v1922 = vmul.f32 %v1257, %v1904
        %v1923 = vmul.f32 %v1259, %v1904
        %v1924 = vmul.f32 %v1262, %v1904
        %v1925 = vmul.f32 %v1264, %v1904
        %v1926 = vmul.f32 %v1267, %v1904
        %v1927 = vmul.f32 %v1269, %v1904
        %v1928 = vmul.f32 %v1272, %v1904
        %v1929 = vmul.f32 %v1274, %v1904
        %v1930 = vmul.f32 %v1277, %v1904
        %v1931 = vmul.f32 %v1279, %v1904
        %v1932 = vmul.f32 %v1282, %v1904
        %v1933 = vmul.f32 %v1284, %v1904
        %v1934 = vmul.f32 %v1287, %v1904
        %v1935 = vmul.f32 %v1289, %v1904
        %v1936 = vmul.f32 %v1292, %v1904
        %v1937 = vmul.f32 %v1294, %v1904
        %v1938 = vmul.f32 %v1297, %v1904
        %v1939 = vmul.f32 %v1299, %v1904
        %v1940 = vmul.f32 %v1302, %v1904
        %v1941 = vmul.f32 %v1304, %v1904
        %v1942 = vmul.f32 %v1307, %v1904
        %v1943 = vmul.f32 %v1309, %v1904
        %v1944 = vmul.f32 %v1312, %v1904
        %v1945 = vmul.f32 %v1314, %v1904
        %v1946 = vmul.f32 %v1317, %v1904
        %v1947 = vmul.f32 %v1319, %v1904
        %v1948 = vmul.f32 %v1322, %v1904
        %v1949 = vmul.f32 %v1324, %v1904
        %v1950 = vmul.f32 %v1327, %v1904
        %v1951 = vmul.f32 %v1329, %v1904
        %v1952 = vmul.f32 %v1332, %v1904
        %v1953 = vmul.f32 %v1334, %v1904
        %v1954 = vmul.f32 %v1337, %v1904
        %v1955 = vmul.f32 %v1339, %v1904
        %v1956 = vmul.f32 %v1342, %v1904
        %v1957 = vmul.f32 %v1344, %v1904
        %v1958 = vmul.f32 %v1347, %v1904
        %v1959 = vmul.f32 %v1349, %v1904
        %v1960 = vmul.f32 %v1352, %v1904
        %v1961 = vmul.f32 %v1354, %v1904
        %v1962 = vmul.f32 %v1357, %v1904
        %v1963 = vmul.f32 %v1359, %v1904
        %v1964 = vmul.f32 %v1362, %v1904
        %v1965 = vmul.f32 %v1364, %v1904
        %v1966 = vmul.f32 %v1367, %v1904
        %v1967 = vmul.f32 %v1369, %v1904
        %v1968 = vmul.f32 %v1372, %v1904
        %v1969 = vmul.f32 %v1374, %v1904
        %v1970 = vmul.f32 %v1377, %v1904
        %v1971 = vmul.f32 %v1379, %v1904
        %v1972 = vmul.f32 %v1382, %v1904
        %v1973 = vmul.f32 %v1384, %v1904
        %v1974 = vmul.f32 %v1387, %v1904
        %v1975 = vmul.f32 %v1389, %v1904
        %v1976 = vmul.f32 %v1392, %v1904
        %v1977 = vmul.f32 %v1394, %v1904
        %v1978 = vmul.f32 %v1397, %v1904
        %v1979 = vmul.f32 %v1399, %v1904
        %v1980 = vmul.f32 %v1402, %v1904
        %v1981 = vmul.f32 %v1404, %v1904
        %v1982 = vmul.f32 %v1407, %v1904
        %v1983 = vmul.f32 %v1409, %v1904
        %v1984 = vmul.f32 %v1412, %v1904
        %v1985 = vmul.f32 %v1414, %v1904
        %v1986 = vmul.f32 %v1417, %v1904
        %v1987 = vmul.f32 %v1419, %v1904
        %v1988 = vmul.f32 %v1422, %v1904
        %v1989 = vmul.f32 %v1424, %v1904
        %v1990 = vmul.f32 %v1427, %v1904
        %v1991 = vmul.f32 %v1429, %v1904
        %v1992 = vmul.f32 %v1432, %v1904
        %v1993 = vmul.f32 %v1434, %v1904
        %v1994 = vmul.f32 %v1437, %v1904
        %v1995 = vmul.f32 %v1439, %v1904
        %v1996 = vmul.f32 %v1442, %v1904
        %v1997 = vmul.f32 %v1444, %v1904
        %v1998 = vmul.f32 %v1447, %v1904
        %v1999 = vmul.f32 %v1449, %v1904
        %v2000 = vmul.f32 %v1452, %v1904
        %v2001 = vmul.f32 %v1454, %v1904
        %v2002 = vmul.f32 %v1457, %v1904
        %v2003 = vmul.f32 %v1459, %v1904
        %v2004 = vmul.f32 %v1462, %v1904
        %v2005 = vmul.f32 %v1464, %v1904
        %v2006 = vmul.f32 %v1467, %v1904
        %v2007 = vmul.f32 %v1469, %v1904
        %v2008 = vmul.f32 %v1472, %v1904
        %v2009 = vmul.f32 %v1474, %v1904
        %v2010 = vmul.f32 %v1477, %v1904
        %v2011 = vmul.f32 %v1479, %v1904
        %v2012 = vmul.f32 %v1482, %v1904
        %v2013 = vmul.f32 %v1484, %v1904
        %v2014 = vmul.f32 %v1487, %v1904
        %v2015 = vmul.f32 %v1489, %v1904
        %v2016 = vmul.f32 %v1492, %v1904
        %v2017 = vmul.f32 %v1494, %v1904
        %v2018 = vmul.f32 %v1497, %v1904
        %v2019 = vmul.f32 %v1499, %v1904
        %v2020 = vmul.f32 %v1502, %v1904
        %v2021 = vmul.f32 %v1504, %v1904
        %v2022 = vmul.f32 %v1507, %v1904
        %v2023 = vmul.f32 %v1509, %v1904
        %v2024 = vmul.f32 %v1512, %v1904
        %v2025 = vmul.f32 %v1514, %v1904
        %v2026 = vmul.f32 %v1517, %v1904
        %v2027 = vmul.f32 %v1519, %v1904
        %v2028 = vmul.f32 %v1522, %v1904
        %v2029 = vmul.f32 %v1524, %v1904
        %v2030 = vmul.f32 %v1527, %v1904
        %v2031 = vmul.f32 %v1529, %v1904
        %v2032 = vmul.f32 %v1532, %v1904
        %v2033 = vmul.f32 %v1534, %v1904
        %v2034 = vmul.f32 %v1537, %v1904
        %v2035 = vmul.f32 %v1539, %v1904
        %v2036 = vmul.f32 %v1542, %v1904
        %v2037 = vmul.f32 %v1544, %v1904
        %v2038 = vmul.f32 %v1547, %v1904
        %v2039 = vmul.f32 %v1549, %v1904
        %v2040 = vmul.f32 %v1552, %v1904
        %v2041 = vmul.f32 %v1554, %v1904
        %v2042 = vmul.f32 %v1557, %v1904
        %v2043 = vmul.f32 %v1559, %v1904
        %v2044 = vmul.f32 %v1562, %v1904
        %v2045 = vmul.f32 %v1564, %v1904
        %v2046 = vmul.f32 %v1567, %v1904
        %v2047 = vmul.f32 %v1569, %v1904
        %v2048 = vmul.f32 %v1572, %v1904
        %v2049 = vmul.f32 %v1574, %v1904
        %v2050 = vmul.f32 %v1577, %v1904
        %v2051 = vmul.f32 %v1579, %v1904
        %v2052 = vmul.f32 %v1582, %v1904
        %v2053 = vmul.f32 %v1584, %v1904
        %v2054 = vmul.f32 %v1587, %v1904
        %v2055 = vmul.f32 %v1589, %v1904
        %v2056 = vmul.f32 %v1592, %v1904
        %v2057 = vmul.f32 %v1594, %v1904
        %v2058 = vmul.f32 %v1597, %v1904
        %v2059 = vmul.f32 %v1599, %v1904
        %v2060 = vmul.f32 %v1602, %v1904
        %v2061 = vmul.f32 %v1604, %v1904
        %v2062 = vmul.f32 %v1607, %v1904
        %v2063 = vmul.f32 %v1609, %v1904
        %v2064 = vmul.f32 %v1612, %v1904
        %v2065 = vmul.f32 %v1614, %v1904
        %v2066 = vmul.f32 %v1617, %v1904
        %v2067 = vmul.f32 %v1619, %v1904
        %v2068 = vmul.f32 %v1622, %v1904
        %v2069 = vmul.f32 %v1624, %v1904
        %v2070 = vmul.f32 %v1627, %v1904
        %v2071 = vmul.f32 %v1629, %v1904
        %v2072 = vmul.f32 %v1632, %v1904
        %v2073 = vmul.f32 %v1634, %v1904
        %v2074 = vmul.f32 %v1637, %v1904
        %v2075 = vmul.f32 %v1639, %v1904
        %v2076 = vmul.f32 %v1642, %v1904
        %v2077 = vmul.f32 %v1644, %v1904
        %v2078 = vmul.f32 %v1647, %v1904
        %v2079 = vmul.f32 %v1649, %v1904
        %v2080 = vmul.f32 %v1652, %v1904
        %v2081 = vmul.f32 %v1654, %v1904
        %v2082 = vmul.f32 %v1657, %v1904
        %v2083 = vmul.f32 %v1659, %v1904
        %v2084 = vmul.f32 %v1662, %v1904
        %v2085 = vmul.f32 %v1664, %v1904
        %v2086 = vmul.f32 %v1667, %v1904
        %v2087 = vmul.f32 %v1669, %v1904
        %v2088 = vmul.f32 %v1672, %v1904
        %v2089 = vmul.f32 %v1674, %v1904
        %v2090 = vmul.f32 %v1677, %v1904
        %v2091 = vmul.f32 %v1679, %v1904
        %v2092 = vmul.f32 %v1682, %v1904
        %v2093 = vmul.f32 %v1684, %v1904
        %v2094 = vmul.f32 %v1687, %v1904
        %v2095 = vmul.f32 %v1689, %v1904
        %v2096 = vmul.f32 %v1692, %v1904
        %v2097 = vmul.f32 %v1694, %v1904
        %v2098 = vmul.f32 %v1697, %v1904
        %v2099 = vmul.f32 %v1699, %v1904
        %v2100 = vmul.f32 %v1702, %v1904
        %v2101 = vmul.f32 %v1704, %v1904
        %v2102 = vsel %vm1706, %v1217, %v1906
        %v2103 = vsel %vm1707, %v1219, %v1907
        %v2104 = vsel %vm1708, %v1222, %v1908
        %v2105 = vsel %vm1709, %v1224, %v1909
        %v2106 = vsel %vm1710, %v1227, %v1910
        %v2107 = vsel %vm1711, %v1229, %v1911
        %v2108 = vsel %vm1712, %v1232, %v1912
        %v2109 = vsel %vm1713, %v1234, %v1913
        %v2110 = vsel %vm1714, %v1237, %v1914
        %v2111 = vsel %vm1715, %v1239, %v1915
        %v2112 = vsel %vm1716, %v1242, %v1916
        %v2113 = vsel %vm1717, %v1244, %v1917
        %v2114 = vsel %vm1718, %v1247, %v1918
        %v2115 = vsel %vm1719, %v1249, %v1919
        %v2116 = vsel %vm1720, %v1252, %v1920
        %v2117 = vsel %vm1721, %v1254, %v1921
        %v2118 = vsel %vm1722, %v1257, %v1922
        %v2119 = vsel %vm1723, %v1259, %v1923
        %v2120 = vsel %vm1724, %v1262, %v1924
        %v2121 = vsel %vm1725, %v1264, %v1925
        %v2122 = vsel %vm1726, %v1267, %v1926
        %v2123 = vsel %vm1727, %v1269, %v1927
        %v2124 = vsel %vm1728, %v1272, %v1928
        %v2125 = vsel %vm1729, %v1274, %v1929
        %v2126 = vsel %vm1730, %v1277, %v1930
        %v2127 = vsel %vm1731, %v1279, %v1931
        %v2128 = vsel %vm1732, %v1282, %v1932
        %v2129 = vsel %vm1733, %v1284, %v1933
        %v2130 = vsel %vm1734, %v1287, %v1934
        %v2131 = vsel %vm1735, %v1289, %v1935
        %v2132 = vsel %vm1736, %v1292, %v1936
        %v2133 = vsel %vm1737, %v1294, %v1937
        %v2134 = vsel %vm1738, %v1297, %v1938
        %v2135 = vsel %vm1739, %v1299, %v1939
        %v2136 = vsel %vm1740, %v1302, %v1940
        %v2137 = vsel %vm1741, %v1304, %v1941
        %v2138 = vsel %vm1742, %v1307, %v1942
        %v2139 = vsel %vm1743, %v1309, %v1943
        %v2140 = vsel %vm1744, %v1312, %v1944
        %v2141 = vsel %vm1745, %v1314, %v1945
        %v2142 = vsel %vm1746, %v1317, %v1946
        %v2143 = vsel %vm1747, %v1319, %v1947
        %v2144 = vsel %vm1748, %v1322, %v1948
        %v2145 = vsel %vm1749, %v1324, %v1949
        %v2146 = vsel %vm1750, %v1327, %v1950
        %v2147 = vsel %vm1751, %v1329, %v1951
        %v2148 = vsel %vm1752, %v1332, %v1952
        %v2149 = vsel %vm1753, %v1334, %v1953
        %v2150 = vsel %vm1754, %v1337, %v1954
        %v2151 = vsel %vm1755, %v1339, %v1955
        %v2152 = vsel %vm1756, %v1342, %v1956
        %v2153 = vsel %vm1757, %v1344, %v1957
        %v2154 = vsel %vm1758, %v1347, %v1958
        %v2155 = vsel %vm1759, %v1349, %v1959
        %v2156 = vsel %vm1760, %v1352, %v1960
        %v2157 = vsel %vm1761, %v1354, %v1961
        %v2158 = vsel %vm1762, %v1357, %v1962
        %v2159 = vsel %vm1763, %v1359, %v1963
        %v2160 = vsel %vm1764, %v1362, %v1964
        %v2161 = vsel %vm1765, %v1364, %v1965
        %v2162 = vsel %vm1766, %v1367, %v1966
        %v2163 = vsel %vm1767, %v1369, %v1967
        %v2164 = vsel %vm1768, %v1372, %v1968
        %v2165 = vsel %vm1769, %v1374, %v1969
        %v2166 = vsel %vm1770, %v1377, %v1970
        %v2167 = vsel %vm1771, %v1379, %v1971
        %v2168 = vsel %vm1772, %v1382, %v1972
        %v2169 = vsel %vm1773, %v1384, %v1973
        %v2170 = vsel %vm1774, %v1387, %v1974
        %v2171 = vsel %vm1775, %v1389, %v1975
        %v2172 = vsel %vm1776, %v1392, %v1976
        %v2173 = vsel %vm1777, %v1394, %v1977
        %v2174 = vsel %vm1778, %v1397, %v1978
        %v2175 = vsel %vm1779, %v1399, %v1979
        %v2176 = vsel %vm1780, %v1402, %v1980
        %v2177 = vsel %vm1781, %v1404, %v1981
        %v2178 = vsel %vm1782, %v1407, %v1982
        %v2179 = vsel %vm1783, %v1409, %v1983
        %v2180 = vsel %vm1784, %v1412, %v1984
        %v2181 = vsel %vm1785, %v1414, %v1985
        %v2182 = vsel %vm1786, %v1417, %v1986
        %v2183 = vsel %vm1787, %v1419, %v1987
        %v2184 = vsel %vm1788, %v1422, %v1988
        %v2185 = vsel %vm1789, %v1424, %v1989
        %v2186 = vsel %vm1790, %v1427, %v1990
        %v2187 = vsel %vm1791, %v1429, %v1991
        %v2188 = vsel %vm1792, %v1432, %v1992
        %v2189 = vsel %vm1793, %v1434, %v1993
        %v2190 = vsel %vm1794, %v1437, %v1994
        %v2191 = vsel %vm1795, %v1439, %v1995
        %v2192 = vsel %vm1796, %v1442, %v1996
        %v2193 = vsel %vm1797, %v1444, %v1997
        %v2194 = vsel %vm1798, %v1447, %v1998
        %v2195 = vsel %vm1799, %v1449, %v1999
        %v2196 = vsel %vm1800, %v1452, %v2000
        %v2197 = vsel %vm1801, %v1454, %v2001
        %v2198 = vsel %vm1802, %v1457, %v2002
        %v2199 = vsel %vm1803, %v1459, %v2003
        %v2200 = vsel %vm1804, %v1462, %v2004
        %v2201 = vsel %vm1805, %v1464, %v2005
        %v2202 = vsel %vm1806, %v1467, %v2006
        %v2203 = vsel %vm1807, %v1469, %v2007
        %v2204 = vsel %vm1808, %v1472, %v2008
        %v2205 = vsel %vm1809, %v1474, %v2009
        %v2206 = vsel %vm1810, %v1477, %v2010
        %v2207 = vsel %vm1811, %v1479, %v2011
        %v2208 = vsel %vm1812, %v1482, %v2012
        %v2209 = vsel %vm1813, %v1484, %v2013
        %v2210 = vsel %vm1814, %v1487, %v2014
        %v2211 = vsel %vm1815, %v1489, %v2015
        %v2212 = vsel %vm1816, %v1492, %v2016
        %v2213 = vsel %vm1817, %v1494, %v2017
        %v2214 = vsel %vm1818, %v1497, %v2018
        %v2215 = vsel %vm1819, %v1499, %v2019
        %v2216 = vsel %vm1820, %v1502, %v2020
        %v2217 = vsel %vm1821, %v1504, %v2021
        %v2218 = vsel %vm1822, %v1507, %v2022
        %v2219 = vsel %vm1823, %v1509, %v2023
        %v2220 = vsel %vm1824, %v1512, %v2024
        %v2221 = vsel %vm1825, %v1514, %v2025
        %v2222 = vsel %vm1826, %v1517, %v2026
        %v2223 = vsel %vm1827, %v1519, %v2027
        %v2224 = vsel %vm1828, %v1522, %v2028
        %v2225 = vsel %vm1829, %v1524, %v2029
        %v2226 = vsel %vm1830, %v1527, %v2030
        %v2227 = vsel %vm1831, %v1529, %v2031
        %v2228 = vsel %vm1832, %v1532, %v2032
        %v2229 = vsel %vm1833, %v1534, %v2033
        %v2230 = vsel %vm1834, %v1537, %v2034
        %v2231 = vsel %vm1835, %v1539, %v2035
        %v2232 = vsel %vm1836, %v1542, %v2036
        %v2233 = vsel %vm1837, %v1544, %v2037
        %v2234 = vsel %vm1838, %v1547, %v2038
        %v2235 = vsel %vm1839, %v1549, %v2039
        %v2236 = vsel %vm1840, %v1552, %v2040
        %v2237 = vsel %vm1841, %v1554, %v2041
        %v2238 = vsel %vm1842, %v1557, %v2042
        %v2239 = vsel %vm1843, %v1559, %v2043
        %v2240 = vsel %vm1844, %v1562, %v2044
        %v2241 = vsel %vm1845, %v1564, %v2045
        %v2242 = vsel %vm1846, %v1567, %v2046
        %v2243 = vsel %vm1847, %v1569, %v2047
        %v2244 = vsel %vm1848, %v1572, %v2048
        %v2245 = vsel %vm1849, %v1574, %v2049
        %v2246 = vsel %vm1850, %v1577, %v2050
        %v2247 = vsel %vm1851, %v1579, %v2051
        %v2248 = vsel %vm1852, %v1582, %v2052
        %v2249 = vsel %vm1853, %v1584, %v2053
        %v2250 = vsel %vm1854, %v1587, %v2054
        %v2251 = vsel %vm1855, %v1589, %v2055
        %v2252 = vsel %vm1856, %v1592, %v2056
        %v2253 = vsel %vm1857, %v1594, %v2057
        %v2254 = vsel %vm1858, %v1597, %v2058
        %v2255 = vsel %vm1859, %v1599, %v2059
        %v2256 = vsel %vm1860, %v1602, %v2060
        %v2257 = vsel %vm1861, %v1604, %v2061
        %v2258 = vsel %vm1862, %v1607, %v2062
        %v2259 = vsel %vm1863, %v1609, %v2063
        %v2260 = vsel %vm1864, %v1612, %v2064
        %v2261 = vsel %vm1865, %v1614, %v2065
        %v2262 = vsel %vm1866, %v1617, %v2066
        %v2263 = vsel %vm1867, %v1619, %v2067
        %v2264 = vsel %vm1868, %v1622, %v2068
        %v2265 = vsel %vm1869, %v1624, %v2069
        %v2266 = vsel %vm1870, %v1627, %v2070
        %v2267 = vsel %vm1871, %v1629, %v2071
        %v2268 = vsel %vm1872, %v1632, %v2072
        %v2269 = vsel %vm1873, %v1634, %v2073
        %v2270 = vsel %vm1874, %v1637, %v2074
        %v2271 = vsel %vm1875, %v1639, %v2075
        %v2272 = vsel %vm1876, %v1642, %v2076
        %v2273 = vsel %vm1877, %v1644, %v2077
        %v2274 = vsel %vm1878, %v1647, %v2078
        %v2275 = vsel %vm1879, %v1649, %v2079
        %v2276 = vsel %vm1880, %v1652, %v2080
        %v2277 = vsel %vm1881, %v1654, %v2081
        %v2278 = vsel %vm1882, %v1657, %v2082
        %v2279 = vsel %vm1883, %v1659, %v2083
        %v2280 = vsel %vm1884, %v1662, %v2084
        %v2281 = vsel %vm1885, %v1664, %v2085
        %v2282 = vsel %vm1886, %v1667, %v2086
        %v2283 = vsel %vm1887, %v1669, %v2087
        %v2284 = vsel %vm1888, %v1672, %v2088
        %v2285 = vsel %vm1889, %v1674, %v2089
        %v2286 = vsel %vm1890, %v1677, %v2090
        %v2287 = vsel %vm1891, %v1679, %v2091
        %v2288 = vsel %vm1892, %v1682, %v2092
        %v2289 = vsel %vm1893, %v1684, %v2093
        %v2290 = vsel %vm1894, %v1687, %v2094
        %v2291 = vsel %vm1895, %v1689, %v2095
        %v2292 = vsel %vm1896, %v1692, %v2096
        %v2293 = vsel %vm1897, %v1694, %v2097
        %v2294 = vsel %vm1898, %v1697, %v2098
        %v2295 = vsel %vm1899, %v1699, %v2099
        %v2296 = vsel %vm1900, %v1702, %v2100
        %v2297 = vsel %vm1901, %v1704, %v2101
        %v2298 = vpack.c.bf16 %v2102, %v2102
        %v2299 = vpack.c.bf16 %v2103, %v2103
        %v2300 = vpack.c.bf16 %v2104, %v2104
        %v2301 = vpack.c.bf16 %v2105, %v2105
        %v2302 = vpack.c.bf16 %v2106, %v2106
        %v2303 = vpack.c.bf16 %v2107, %v2107
        %v2304 = vpack.c.bf16 %v2108, %v2108
        %v2305 = vpack.c.bf16 %v2109, %v2109
        %v2306 = vpack.c.bf16 %v2110, %v2110
        %v2307 = vpack.c.bf16 %v2111, %v2111
        %v2308 = vpack.c.bf16 %v2112, %v2112
        %v2309 = vpack.c.bf16 %v2113, %v2113
        %v2310 = vpack.c.bf16 %v2114, %v2114
        %v2311 = vpack.c.bf16 %v2115, %v2115
        %v2312 = vpack.c.bf16 %v2116, %v2116
        %v2313 = vpack.c.bf16 %v2117, %v2117
        %v2314 = vpack.c.bf16 %v2118, %v2118
        %v2315 = vpack.c.bf16 %v2119, %v2119
        %v2316 = vpack.c.bf16 %v2120, %v2120
        %v2317 = vpack.c.bf16 %v2121, %v2121
        %v2318 = vpack.c.bf16 %v2122, %v2122
        %v2319 = vpack.c.bf16 %v2123, %v2123
        %v2320 = vpack.c.bf16 %v2124, %v2124
        %v2321 = vpack.c.bf16 %v2125, %v2125
        %v2322 = vpack.c.bf16 %v2126, %v2126
        %v2323 = vpack.c.bf16 %v2127, %v2127
        %v2324 = vpack.c.bf16 %v2128, %v2128
        %v2325 = vpack.c.bf16 %v2129, %v2129
        %v2326 = vpack.c.bf16 %v2130, %v2130
        %v2327 = vpack.c.bf16 %v2131, %v2131
        %v2328 = vpack.c.bf16 %v2132, %v2132
        %v2329 = vpack.c.bf16 %v2133, %v2133
        %v2330 = vpack.c.bf16 %v2134, %v2134
        %v2331 = vpack.c.bf16 %v2135, %v2135
        %v2332 = vpack.c.bf16 %v2136, %v2136
        %v2333 = vpack.c.bf16 %v2137, %v2137
        %v2334 = vpack.c.bf16 %v2138, %v2138
        %v2335 = vpack.c.bf16 %v2139, %v2139
        %v2336 = vpack.c.bf16 %v2140, %v2140
        %v2337 = vpack.c.bf16 %v2141, %v2141
        %v2338 = vpack.c.bf16 %v2142, %v2142
        %v2339 = vpack.c.bf16 %v2143, %v2143
        %v2340 = vpack.c.bf16 %v2144, %v2144
        %v2341 = vpack.c.bf16 %v2145, %v2145
        %v2342 = vpack.c.bf16 %v2146, %v2146
        %v2343 = vpack.c.bf16 %v2147, %v2147
        %v2344 = vpack.c.bf16 %v2148, %v2148
        %v2345 = vpack.c.bf16 %v2149, %v2149
        %v2346 = vpack.c.bf16 %v2150, %v2150
        %v2347 = vpack.c.bf16 %v2151, %v2151
        %v2348 = vpack.c.bf16 %v2152, %v2152
        %v2349 = vpack.c.bf16 %v2153, %v2153
        %v2350 = vpack.c.bf16 %v2154, %v2154
        %v2351 = vpack.c.bf16 %v2155, %v2155
        %v2352 = vpack.c.bf16 %v2156, %v2156
        %v2353 = vpack.c.bf16 %v2157, %v2157
        %v2354 = vpack.c.bf16 %v2158, %v2158
        %v2355 = vpack.c.bf16 %v2159, %v2159
        %v2356 = vpack.c.bf16 %v2160, %v2160
        %v2357 = vpack.c.bf16 %v2161, %v2161
        %v2358 = vpack.c.bf16 %v2162, %v2162
        %v2359 = vpack.c.bf16 %v2163, %v2163
        %v2360 = vpack.c.bf16 %v2164, %v2164
        %v2361 = vpack.c.bf16 %v2165, %v2165
        %v2362 = vpack.c.bf16 %v2166, %v2166
        %v2363 = vpack.c.bf16 %v2167, %v2167
        %v2364 = vpack.c.bf16 %v2168, %v2168
        %v2365 = vpack.c.bf16 %v2169, %v2169
        %v2366 = vpack.c.bf16 %v2170, %v2170
        %v2367 = vpack.c.bf16 %v2171, %v2171
        %v2368 = vpack.c.bf16 %v2172, %v2172
        %v2369 = vpack.c.bf16 %v2173, %v2173
        %v2370 = vpack.c.bf16 %v2174, %v2174
        %v2371 = vpack.c.bf16 %v2175, %v2175
        %v2372 = vpack.c.bf16 %v2176, %v2176
        %v2373 = vpack.c.bf16 %v2177, %v2177
        %v2374 = vpack.c.bf16 %v2178, %v2178
        %v2375 = vpack.c.bf16 %v2179, %v2179
        %v2376 = vpack.c.bf16 %v2180, %v2180
        %v2377 = vpack.c.bf16 %v2181, %v2181
        %v2378 = vpack.c.bf16 %v2182, %v2182
        %v2379 = vpack.c.bf16 %v2183, %v2183
        %v2380 = vpack.c.bf16 %v2184, %v2184
        %v2381 = vpack.c.bf16 %v2185, %v2185
        %v2382 = vpack.c.bf16 %v2186, %v2186
        %v2383 = vpack.c.bf16 %v2187, %v2187
        %v2384 = vpack.c.bf16 %v2188, %v2188
        %v2385 = vpack.c.bf16 %v2189, %v2189
        %v2386 = vpack.c.bf16 %v2190, %v2190
        %v2387 = vpack.c.bf16 %v2191, %v2191
        %v2388 = vpack.c.bf16 %v2192, %v2192
        %v2389 = vpack.c.bf16 %v2193, %v2193
        %v2390 = vpack.c.bf16 %v2194, %v2194
        %v2391 = vpack.c.bf16 %v2195, %v2195
        %v2392 = vpack.c.bf16 %v2196, %v2196
        %v2393 = vpack.c.bf16 %v2197, %v2197
        %v2394 = vpack.c.bf16 %v2198, %v2198
        %v2395 = vpack.c.bf16 %v2199, %v2199
        %v2396 = vpack.c.bf16 %v2200, %v2200
        %v2397 = vpack.c.bf16 %v2201, %v2201
        %v2398 = vpack.c.bf16 %v2202, %v2202
        %v2399 = vpack.c.bf16 %v2203, %v2203
        %v2400 = vpack.c.bf16 %v2204, %v2204
        %v2401 = vpack.c.bf16 %v2205, %v2205
        %v2402 = vpack.c.bf16 %v2206, %v2206
        %v2403 = vpack.c.bf16 %v2207, %v2207
        %v2404 = vpack.c.bf16 %v2208, %v2208
        %v2405 = vpack.c.bf16 %v2209, %v2209
        %v2406 = vpack.c.bf16 %v2210, %v2210
        %v2407 = vpack.c.bf16 %v2211, %v2211
        %v2408 = vpack.c.bf16 %v2212, %v2212
        %v2409 = vpack.c.bf16 %v2213, %v2213
        %v2410 = vpack.c.bf16 %v2214, %v2214
        %v2411 = vpack.c.bf16 %v2215, %v2215
        %v2412 = vpack.c.bf16 %v2216, %v2216
        %v2413 = vpack.c.bf16 %v2217, %v2217
        %v2414 = vpack.c.bf16 %v2218, %v2218
        %v2415 = vpack.c.bf16 %v2219, %v2219
        %v2416 = vpack.c.bf16 %v2220, %v2220
        %v2417 = vpack.c.bf16 %v2221, %v2221
        %v2418 = vpack.c.bf16 %v2222, %v2222
        %v2419 = vpack.c.bf16 %v2223, %v2223
        %v2420 = vpack.c.bf16 %v2224, %v2224
        %v2421 = vpack.c.bf16 %v2225, %v2225
        %v2422 = vpack.c.bf16 %v2226, %v2226
        %v2423 = vpack.c.bf16 %v2227, %v2227
        %v2424 = vpack.c.bf16 %v2228, %v2228
        %v2425 = vpack.c.bf16 %v2229, %v2229
        %v2426 = vpack.c.bf16 %v2230, %v2230
        %v2427 = vpack.c.bf16 %v2231, %v2231
        %v2428 = vpack.c.bf16 %v2232, %v2232
        %v2429 = vpack.c.bf16 %v2233, %v2233
        %v2430 = vpack.c.bf16 %v2234, %v2234
        %v2431 = vpack.c.bf16 %v2235, %v2235
        %v2432 = vpack.c.bf16 %v2236, %v2236
        %v2433 = vpack.c.bf16 %v2237, %v2237
        %v2434 = vpack.c.bf16 %v2238, %v2238
        %v2435 = vpack.c.bf16 %v2239, %v2239
        %v2436 = vpack.c.bf16 %v2240, %v2240
        %v2437 = vpack.c.bf16 %v2241, %v2241
        %v2438 = vpack.c.bf16 %v2242, %v2242
        %v2439 = vpack.c.bf16 %v2243, %v2243
        %v2440 = vpack.c.bf16 %v2244, %v2244
        %v2441 = vpack.c.bf16 %v2245, %v2245
        %v2442 = vpack.c.bf16 %v2246, %v2246
        %v2443 = vpack.c.bf16 %v2247, %v2247
        %v2444 = vpack.c.bf16 %v2248, %v2248
        %v2445 = vpack.c.bf16 %v2249, %v2249
        %v2446 = vpack.c.bf16 %v2250, %v2250
        %v2447 = vpack.c.bf16 %v2251, %v2251
        %v2448 = vpack.c.bf16 %v2252, %v2252
        %v2449 = vpack.c.bf16 %v2253, %v2253
        %v2450 = vpack.c.bf16 %v2254, %v2254
        %v2451 = vpack.c.bf16 %v2255, %v2255
        %v2452 = vpack.c.bf16 %v2256, %v2256
        %v2453 = vpack.c.bf16 %v2257, %v2257
        %v2454 = vpack.c.bf16 %v2258, %v2258
        %v2455 = vpack.c.bf16 %v2259, %v2259
        %v2456 = vpack.c.bf16 %v2260, %v2260
        %v2457 = vpack.c.bf16 %v2261, %v2261
        %v2458 = vpack.c.bf16 %v2262, %v2262
        %v2459 = vpack.c.bf16 %v2263, %v2263
        %v2460 = vpack.c.bf16 %v2264, %v2264
        %v2461 = vpack.c.bf16 %v2265, %v2265
        %v2462 = vpack.c.bf16 %v2266, %v2266
        %v2463 = vpack.c.bf16 %v2267, %v2267
        %v2464 = vpack.c.bf16 %v2268, %v2268
        %v2465 = vpack.c.bf16 %v2269, %v2269
        %v2466 = vpack.c.bf16 %v2270, %v2270
        %v2467 = vpack.c.bf16 %v2271, %v2271
        %v2468 = vpack.c.bf16 %v2272, %v2272
        %v2469 = vpack.c.bf16 %v2273, %v2273
        %v2470 = vpack.c.bf16 %v2274, %v2274
        %v2471 = vpack.c.bf16 %v2275, %v2275
        %v2472 = vpack.c.bf16 %v2276, %v2276
        %v2473 = vpack.c.bf16 %v2277, %v2277
        %v2474 = vpack.c.bf16 %v2278, %v2278
        %v2475 = vpack.c.bf16 %v2279, %v2279
        %v2476 = vpack.c.bf16 %v2280, %v2280
        %v2477 = vpack.c.bf16 %v2281, %v2281
        %v2478 = vpack.c.bf16 %v2282, %v2282
        %v2479 = vpack.c.bf16 %v2283, %v2283
        %v2480 = vpack.c.bf16 %v2284, %v2284
        %v2481 = vpack.c.bf16 %v2285, %v2285
        %v2482 = vpack.c.bf16 %v2286, %v2286
        %v2483 = vpack.c.bf16 %v2287, %v2287
        %v2484 = vpack.c.bf16 %v2288, %v2288
        %v2485 = vpack.c.bf16 %v2289, %v2289
        %v2486 = vpack.c.bf16 %v2290, %v2290
        %v2487 = vpack.c.bf16 %v2291, %v2291
        %v2488 = vpack.c.bf16 %v2292, %v2292
        %v2489 = vpack.c.bf16 %v2293, %v2293
        %v2490 = vpack.c.bf16 %v2294, %v2294
        %v2491 = vpack.c.bf16 %v2295, %v2295
        %v2492 = vpack.c.bf16 %v2296, %v2296
        %v2493 = vpack.c.bf16 %v2297, %v2297
        %2494 = vst [vmem:[%s191] sm:$0xf] %v2298
        %2495 = vst [vmem:[%s191 + $0x4] sm:$0xf] %v2299
        %2496 = vst [vmem:[%s191 + $0x8] sm:$0xf] %v2300
        %2497 = vst [vmem:[%s191 + $0xc] sm:$0xf] %v2301
        %2498 = vst [vmem:[%s191 + $0x10] sm:$0xf] %v2302
        %2499 = vst [vmem:[%s191 + $0x14] sm:$0xf] %v2303
        %2500 = vst [vmem:[%s191 + $0x18] sm:$0xf] %v2304
        %2501 = vst [vmem:[%s191 + $0x1c] sm:$0xf] %v2305
        %2502 = vst [vmem:[%s191 + $0x20] sm:$0xf] %v2306
        %2503 = vst [vmem:[%s191 + $0x24] sm:$0xf] %v2307
        %2504 = vst [vmem:[%s191 + $0x28] sm:$0xf] %v2308
        %2505 = vst [vmem:[%s191 + $0x2c] sm:$0xf] %v2309
        %2506 = vst [vmem:[%s191 + $0x30] sm:$0xf] %v2310
        %2507 = vst [vmem:[%s191 + $0x34] sm:$0xf] %v2311
        %2508 = vst [vmem:[%s191 + $0x38] sm:$0xf] %v2312
        %2509 = vst [vmem:[%s191 + $0x3c] sm:$0xf] %v2313
        %2510 = vst [vmem:[%s191 + $0x40] sm:$0xf] %v2314
        %2511 = vst [vmem:[%s191 + $0x44] sm:$0xf] %v2315
        %2512 = vst [vmem:[%s191 + $0x48] sm:$0xf] %v2316
        %2513 = vst [vmem:[%s191 + $0x4c] sm:$0xf] %v2317
        %2514 = vst [vmem:[%s191 + $0x50] sm:$0xf] %v2318
        %2515 = vst [vmem:[%s191 + $0x54] sm:$0xf] %v2319
        %2516 = vst [vmem:[%s191 + $0x58] sm:$0xf] %v2320
        %2517 = vst [vmem:[%s191 + $0x5c] sm:$0xf] %v2321
        %2518 = vst [vmem:[%s191 + $0x60] sm:$0xf] %v2322
        %2519 = vst [vmem:[%s191 + $0x64] sm:$0xf] %v2323
        %2520 = vst [vmem:[%s191 + $0x68] sm:$0xf] %v2324
        %2521 = vst [vmem:[%s191 + $0x6c] sm:$0xf] %v2325
        %2522 = vst [vmem:[%s191 + $0x70] sm:$0xf] %v2326
        %2523 = vst [vmem:[%s191 + $0x74] sm:$0xf] %v2327
        %2524 = vst [vmem:[%s191 + $0x78] sm:$0xf] %v2328
        %2525 = vst [vmem:[%s191 + $0x7c] sm:$0xf] %v2329
        %2526 = vst [vmem:[%s191 + $0x80] sm:$0xf] %v2330
        %2527 = vst [vmem:[%s191 + $0x84] sm:$0xf] %v2331
        %2528 = vst [vmem:[%s191 + $0x88] sm:$0xf] %v2332
        %2529 = vst [vmem:[%s191 + $0x8c] sm:$0xf] %v2333
        %2530 = vst [vmem:[%s191 + $0x90] sm:$0xf] %v2334
        %2531 = vst [vmem:[%s191 + $0x94] sm:$0xf] %v2335
        %2532 = vst [vmem:[%s191 + $0x98] sm:$0xf] %v2336
        %2533 = vst [vmem:[%s191 + $0x9c] sm:$0xf] %v2337
        %2534 = vst [vmem:[%s191 + $0xa0] sm:$0xf] %v2338
        %2535 = vst [vmem:[%s191 + $0xa4] sm:$0xf] %v2339
        %2536 = vst [vmem:[%s191 + $0xa8] sm:$0xf] %v2340
        %2537 = vst [vmem:[%s191 + $0xac] sm:$0xf] %v2341
        %2538 = vst [vmem:[%s191 + $0xb0] sm:$0xf] %v2342
        %2539 = vst [vmem:[%s191 + $0xb4] sm:$0xf] %v2343
        %2540 = vst [vmem:[%s191 + $0xb8] sm:$0xf] %v2344
        %2541 = vst [vmem:[%s191 + $0xbc] sm:$0xf] %v2345
        %2542 = vst [vmem:[%s191 + $0xc0] sm:$0xf] %v2346
        %2543 = vst [vmem:[%s191 + $0xc4] sm:$0xf] %v2347
        %2544 = vst [vmem:[%s191 + $0xc8] sm:$0xf] %v2348
        %2545 = vst [vmem:[%s191 + $0xcc] sm:$0xf] %v2349
        %2546 = vst [vmem:[%s191 + $0xd0] sm:$0xf] %v2350
        %2547 = vst [vmem:[%s191 + $0xd4] sm:$0xf] %v2351
        %2548 = vst [vmem:[%s191 + $0xd8] sm:$0xf] %v2352
        %2549 = vst [vmem:[%s191 + $0xdc] sm:$0xf] %v2353
        %2550 = vst [vmem:[%s191 + $0xe0] sm:$0xf] %v2354
        %2551 = vst [vmem:[%s191 + $0xe4] sm:$0xf] %v2355
        %2552 = vst [vmem:[%s191 + $0xe8] sm:$0xf] %v2356
        %2553 = vst [vmem:[%s191 + $0xec] sm:$0xf] %v2357
        %2554 = vst [vmem:[%s191 + $0xf0] sm:$0xf] %v2358
        %2555 = vst [vmem:[%s191 + $0xf4] sm:$0xf] %v2359
        %2556 = vst [vmem:[%s191 + $0xf8] sm:$0xf] %v2360
        %2557 = vst [vmem:[%s191 + $0xfc] sm:$0xf] %v2361
        %2558 = vst [vmem:[%s191 + $0x100] sm:$0xf] %v2362
        %2559 = vst [vmem:[%s191 + $0x104] sm:$0xf] %v2363
        %2560 = vst [vmem:[%s191 + $0x108] sm:$0xf] %v2364
        %2561 = vst [vmem:[%s191 + $0x10c] sm:$0xf] %v2365
        %2562 = vst [vmem:[%s191 + $0x110] sm:$0xf] %v2366
        %2563 = vst [vmem:[%s191 + $0x114] sm:$0xf] %v2367
        %2564 = vst [vmem:[%s191 + $0x118] sm:$0xf] %v2368
        %2565 = vst [vmem:[%s191 + $0x11c] sm:$0xf] %v2369
        %2566 = vst [vmem:[%s191 + $0x120] sm:$0xf] %v2370
        %2567 = vst [vmem:[%s191 + $0x124] sm:$0xf] %v2371
        %2568 = vst [vmem:[%s191 + $0x128] sm:$0xf] %v2372
        %2569 = vst [vmem:[%s191 + $0x12c] sm:$0xf] %v2373
        %2570 = vst [vmem:[%s191 + $0x130] sm:$0xf] %v2374
        %2571 = vst [vmem:[%s191 + $0x134] sm:$0xf] %v2375
        %2572 = vst [vmem:[%s191 + $0x138] sm:$0xf] %v2376
        %2573 = vst [vmem:[%s191 + $0x13c] sm:$0xf] %v2377
        %2574 = vst [vmem:[%s191 + $0x140] sm:$0xf] %v2378
        %2575 = vst [vmem:[%s191 + $0x144] sm:$0xf] %v2379
        %2576 = vst [vmem:[%s191 + $0x148] sm:$0xf] %v2380
        %2577 = vst [vmem:[%s191 + $0x14c] sm:$0xf] %v2381
        %2578 = vst [vmem:[%s191 + $0x150] sm:$0xf] %v2382
        %2579 = vst [vmem:[%s191 + $0x154] sm:$0xf] %v2383
        %2580 = vst [vmem:[%s191 + $0x158] sm:$0xf] %v2384
        %2581 = vst [vmem:[%s191 + $0x15c] sm:$0xf] %v2385
        %2582 = vst [vmem:[%s191 + $0x160] sm:$0xf] %v2386
        %2583 = vst [vmem:[%s191 + $0x164] sm:$0xf] %v2387
        %2584 = vst [vmem:[%s191 + $0x168] sm:$0xf] %v2388
        %2585 = vst [vmem:[%s191 + $0x16c] sm:$0xf] %v2389
        %2586 = vst [vmem:[%s191 + $0x170] sm:$0xf] %v2390
        %2587 = vst [vmem:[%s191 + $0x174] sm:$0xf] %v2391
        %2588 = vst [vmem:[%s191 + $0x178] sm:$0xf] %v2392
        %2589 = vst [vmem:[%s191 + $0x17c] sm:$0xf] %v2393
        %2590 = vst [vmem:[%s191 + $0x180] sm:$0xf] %v2394
        %2591 = vst [vmem:[%s191 + $0x184] sm:$0xf] %v2395
        %2592 = vst [vmem:[%s191 + $0x188] sm:$0xf] %v2396
        %2593 = vst [vmem:[%s191 + $0x18c] sm:$0xf] %v2397
        %2594 = vst [vmem:[%s191 + $0x190] sm:$0xf] %v2398
        %2595 = vst [vmem:[%s191 + $0x194] sm:$0xf] %v2399
        %2596 = vst [vmem:[%s191 + $0x198] sm:$0xf] %v2400
        %2597 = vst [vmem:[%s191 + $0x19c] sm:$0xf] %v2401
        %2598 = vst [vmem:[%s191 + $0x1a0] sm:$0xf] %v2402
        %2599 = vst [vmem:[%s191 + $0x1a4] sm:$0xf] %v2403
        %2600 = vst [vmem:[%s191 + $0x1a8] sm:$0xf] %v2404
        %2601 = vst [vmem:[%s191 + $0x1ac] sm:$0xf] %v2405
        %2602 = vst [vmem:[%s191 + $0x1b0] sm:$0xf] %v2406
        %2603 = vst [vmem:[%s191 + $0x1b4] sm:$0xf] %v2407
        %2604 = vst [vmem:[%s191 + $0x1b8] sm:$0xf] %v2408
        %2605 = vst [vmem:[%s191 + $0x1bc] sm:$0xf] %v2409
        %2606 = vst [vmem:[%s191 + $0x1c0] sm:$0xf] %v2410
        %2607 = vst [vmem:[%s191 + $0x1c4] sm:$0xf] %v2411
        %2608 = vst [vmem:[%s191 + $0x1c8] sm:$0xf] %v2412
        %2609 = vst [vmem:[%s191 + $0x1cc] sm:$0xf] %v2413
        %2610 = vst [vmem:[%s191 + $0x1d0] sm:$0xf] %v2414
        %2611 = vst [vmem:[%s191 + $0x1d4] sm:$0xf] %v2415
        %2612 = vst [vmem:[%s191 + $0x1d8] sm:$0xf] %v2416
        %2613 = vst [vmem:[%s191 + $0x1dc] sm:$0xf] %v2417
        %2614 = vst [vmem:[%s191 + $0x1e0] sm:$0xf] %v2418
        %2615 = vst [vmem:[%s191 + $0x1e4] sm:$0xf] %v2419
        %2616 = vst [vmem:[%s191 + $0x1e8] sm:$0xf] %v2420
        %2617 = vst [vmem:[%s191 + $0x1ec] sm:$0xf] %v2421
        %2618 = vst [vmem:[%s191 + $0x1f0] sm:$0xf] %v2422
        %2619 = vst [vmem:[%s191 + $0x1f4] sm:$0xf] %v2423
        %2620 = vst [vmem:[%s191 + $0x1f8] sm:$0xf] %v2424
        %2621 = vst [vmem:[%s191 + $0x1fc] sm:$0xf] %v2425
        %2622 = vst [vmem:[%s191 + $0x200] sm:$0xf] %v2426
        %2623 = vst [vmem:[%s191 + $0x204] sm:$0xf] %v2427
        %2624 = vst [vmem:[%s191 + $0x208] sm:$0xf] %v2428
        %2625 = vst [vmem:[%s191 + $0x20c] sm:$0xf] %v2429
        %2626 = vst [vmem:[%s191 + $0x210] sm:$0xf] %v2430
        %2627 = vst [vmem:[%s191 + $0x214] sm:$0xf] %v2431
        %2628 = vst [vmem:[%s191 + $0x218] sm:$0xf] %v2432
        %2629 = vst [vmem:[%s191 + $0x21c] sm:$0xf] %v2433
        %2630 = vst [vmem:[%s191 + $0x220] sm:$0xf] %v2434
        %2631 = vst [vmem:[%s191 + $0x224] sm:$0xf] %v2435
        %2632 = vst [vmem:[%s191 + $0x228] sm:$0xf] %v2436
        %2633 = vst [vmem:[%s191 + $0x22c] sm:$0xf] %v2437
        %2634 = vst [vmem:[%s191 + $0x230] sm:$0xf] %v2438
        %2635 = vst [vmem:[%s191 + $0x234] sm:$0xf] %v2439
        %2636 = vst [vmem:[%s191 + $0x238] sm:$0xf] %v2440
        %2637 = vst [vmem:[%s191 + $0x23c] sm:$0xf] %v2441
        %2638 = vst [vmem:[%s191 + $0x240] sm:$0xf] %v2442
        %2639 = vst [vmem:[%s191 + $0x244] sm:$0xf] %v2443
        %2640 = vst [vmem:[%s191 + $0x248] sm:$0xf] %v2444
        %2641 = vst [vmem:[%s191 + $0x24c] sm:$0xf] %v2445
        %2642 = vst [vmem:[%s191 + $0x250] sm:$0xf] %v2446
        %2643 = vst [vmem:[%s191 + $0x254] sm:$0xf] %v2447
        %2644 = vst [vmem:[%s191 + $0x258] sm:$0xf] %v2448
        %2645 = vst [vmem:[%s191 + $0x25c] sm:$0xf] %v2449
        %2646 = vst [vmem:[%s191 + $0x260] sm:$0xf] %v2450
        %2647 = vst [vmem:[%s191 + $0x264] sm:$0xf] %v2451
        %2648 = vst [vmem:[%s191 + $0x268] sm:$0xf] %v2452
        %2649 = vst [vmem:[%s191 + $0x26c] sm:$0xf] %v2453
        %2650 = vst [vmem:[%s191 + $0x270] sm:$0xf] %v2454
        %2651 = vst [vmem:[%s191 + $0x274] sm:$0xf] %v2455
        %2652 = vst [vmem:[%s191 + $0x278] sm:$0xf] %v2456
        %2653 = vst [vmem:[%s191 + $0x27c] sm:$0xf] %v2457
        %2654 = vst [vmem:[%s191 + $0x280] sm:$0xf] %v2458
        %2655 = vst [vmem:[%s191 + $0x284] sm:$0xf] %v2459
        %2656 = vst [vmem:[%s191 + $0x288] sm:$0xf] %v2460
        %2657 = vst [vmem:[%s191 + $0x28c] sm:$0xf] %v2461
        %2658 = vst [vmem:[%s191 + $0x290] sm:$0xf] %v2462
        %2659 = vst [vmem:[%s191 + $0x294] sm:$0xf] %v2463
        %2660 = vst [vmem:[%s191 + $0x298] sm:$0xf] %v2464
        %2661 = vst [vmem:[%s191 + $0x29c] sm:$0xf] %v2465
        %2662 = vst [vmem:[%s191 + $0x2a0] sm:$0xf] %v2466
        %2663 = vst [vmem:[%s191 + $0x2a4] sm:$0xf] %v2467
        %2664 = vst [vmem:[%s191 + $0x2a8] sm:$0xf] %v2468
        %2665 = vst [vmem:[%s191 + $0x2ac] sm:$0xf] %v2469
        %2666 = vst [vmem:[%s191 + $0x2b0] sm:$0xf] %v2470
        %2667 = vst [vmem:[%s191 + $0x2b4] sm:$0xf] %v2471
        %2668 = vst [vmem:[%s191 + $0x2b8] sm:$0xf] %v2472
        %2669 = vst [vmem:[%s191 + $0x2bc] sm:$0xf] %v2473
        %2670 = vst [vmem:[%s191 + $0x2c0] sm:$0xf] %v2474
        %2671 = vst [vmem:[%s191 + $0x2c4] sm:$0xf] %v2475
        %2672 = vst [vmem:[%s191 + $0x2c8] sm:$0xf] %v2476
        %2673 = vst [vmem:[%s191 + $0x2cc] sm:$0xf] %v2477
        %2674 = vst [vmem:[%s191 + $0x2d0] sm:$0xf] %v2478
        %2675 = vst [vmem:[%s191 + $0x2d4] sm:$0xf] %v2479
        %2676 = vst [vmem:[%s191 + $0x2d8] sm:$0xf] %v2480
        %2677 = vst [vmem:[%s191 + $0x2dc] sm:$0xf] %v2481
        %2678 = vst [vmem:[%s191 + $0x2e0] sm:$0xf] %v2482
        %2679 = vst [vmem:[%s191 + $0x2e4] sm:$0xf] %v2483
        %2680 = vst [vmem:[%s191 + $0x2e8] sm:$0xf] %v2484
        %2681 = vst [vmem:[%s191 + $0x2ec] sm:$0xf] %v2485
        %2682 = vst [vmem:[%s191 + $0x2f0] sm:$0xf] %v2486
        %2683 = vst [vmem:[%s191 + $0x2f4] sm:$0xf] %v2487
        %2684 = vst [vmem:[%s191 + $0x2f8] sm:$0xf] %v2488
        %2685 = vst [vmem:[%s191 + $0x2fc] sm:$0xf] %v2489
        %2686 = vst [vmem:[%s191 + $0x300] sm:$0xf] %v2490
        %2687 = vst [vmem:[%s191 + $0x304] sm:$0xf] %v2491
        %2688 = vst [vmem:[%s191 + $0x308] sm:$0xf] %v2492
        %2689 = vst [vmem:[%s191 + $0x30c] sm:$0xf] %v2493
        %s2690 = sand.u32 %s115, 1
        %s2691 = scalar_lea.sflag [#allocation3], %s2690
        %s2692 = sand.u32 %s115, 1
        %s2693 = smul.addr %s2692, 784
        %s2694 = scalar_lea.vmem [#allocation2], %s2693
        // Predicated region
        $region37: #{tpu_custom_call.1} parent=35 // pred_check
          %p2695 = pneg %p125
        $region38: #{tpu_custom_call.1} parent=35 // pred_check_branch
          %2697 = sbr.rel (%p2695) target = $region40
        $region39: #{tpu_custom_call.1} parent=35 // pred_region
          %s2698 = smul.u32 196, %s18
          %2700 = vsyncadd %s2691, 0
          %s2701 = smul.addr %s2698, 4
          %s2702 = scalar_lea.hbm %s4, %s2701
          %s2703 = sshll.u32 %s2694, 4
          %s2704 = int_to_ptr.vmem [resolvable:$true] %s2703
          %s2705 = sshll.u32 %s2702, 4
          %s2706 = int_to_ptr.hbm [resolvable:$true] %s2705
          %2711 = dma.vmem_to_hbm [thread:$0]  %s2704, 12544, %s2706, %s2691, 64, 64, 4
        $region40: #{tpu_custom_call.1} parent=35 // pred_fallthru
          _
      $region36: #{tpu_custom_call.1} parent=5 // pred_fallthru
        _
      %p2712 = scmp.le.s32.totalorder 2, %s13
      // Predicated region
      $region41: #{tpu_custom_call.1} parent=5 // pred_check
        %p2713 = pneg %p2712
      $region42: #{tpu_custom_call.1} parent=5 // pred_check_branch
        %2715 = sbr.rel (%p2713) target = $region44
      $region43: #{tpu_custom_call.1} parent=5 // pred_region
        %s2716 = ssub.s32 %s13, 2
        // Predicated region
        $region45: #{tpu_custom_call.1} parent=43 // pred_check
          %p2717 = pneg %p131
        $region46: #{tpu_custom_call.1} parent=43 // pred_check_branch
          %2719 = sbr.rel (%p2717) target = $region48
        $region47: #{tpu_custom_call.1} parent=43 // pred_region
          %s2720 = sand.u32 %s116, 1
          %s2721 = scalar_lea.sflag [#allocation3], %s2720
          %s2722 = sand.u32 %s116, 1
          %s2723 = smul.addr %s2722, 784
          %s2724 = scalar_lea.vmem [#allocation2], %s2723
          %2726 = dma.done %s2721, 12544
        $region48: #{tpu_custom_call.1} parent=43 // pred_fallthru
          _
      $region44: #{tpu_custom_call.1} parent=5 // pred_fallthru
        _
    $region6: #{tpu_custom_call.1} parent=1 // loop_footer
      %s17 = sadd.s32 1, %s13
    $region7: #{tpu_custom_call.1} parent=1 // loop_footer_branch
      %12 = sbr.rel target = $region3
    $region8: #{tpu_custom_call.1} parent=1 // loop_exit
      _
    %2727 = vsyncpa [#allocation3], 1
    %s2728 = scalar_lea.sflag [#allocation3], 1
    %2729 = vsyncpa %s2728, 1

</llo_original>
